<compile_context>
chip_gen: v7x
topology: tpu7x:2x2x1
jax: 0.10.0
libtpu: 0.0.40
codegen_flags: <defaults>
</compile_context>

<pallas_src>
import functools

import jax
import jax.numpy as jnp
from jax.experimental import pallas as pl
from jax.experimental.pallas import tpu as pltpu

_LN_EPS = 1e-5            # torch nn.LayerNorm default


def _vmem_capacity_bytes():
    try:
        return int(pltpu.get_tpu_info().vmem_capacity_bytes)
    except Exception:     # conservative fallback (v7x-sized VMEM)
        return 64 * 1024 * 1024


_VMEM_CAP = _vmem_capacity_bytes()
# Leave headroom below physical capacity: 48 MiB on 64 MiB parts (v7x),
# 96 MiB on 128 MiB parts (v5e / v6e).
_VMEM_LIMIT = int(min(100 * 1024 * 1024,
                      max(32 * 1024 * 1024, (_VMEM_CAP * 3) // 4)))


def _cparams(sem):
    return pltpu.CompilerParams(dimension_semantics=sem,
                                vmem_limit_bytes=_VMEM_LIMIT)


def _sublane(dtype):
    return 16 if jnp.dtype(dtype) == jnp.bfloat16 else 8


def _divisor_tile(dim, target, base):
    """Largest multiple of `base` that divides `dim` and is <= target, else `dim`."""
    if dim <= target:
        return dim
    t = min(target, dim)
    t -= t % base
    while t >= base:
        if dim % t == 0:
            return t
        t -= base
    return dim


# ------------------------- exact (erf) GELU, in-kernel ------------------------
def _erf_f32(x):
    # TODO(synk): Abramowitz&Stegun 7.1.26 polynomial erf (|err| <= 1.5e-7) is
    # used instead of lax.erf to guarantee Mosaic lowering; matches
    # F.gelu(approximate=False) to ~bf16-level precision.
    a = jnp.abs(x)
    t = pl.reciprocal(1.0 + 0.3275911 * a, approx=True)          # EUP slot
    poly = t * (0.254829592 + t * (-0.284496736 + t * (1.421413741
                + t * (-1.453152027 + t * 1.061405429))))
    e = 1.0 - poly * jnp.exp(-a * a)
    return jnp.where(x < 0.0, -e, e)


def _gelu_exact(x):
    return 0.5 * x * (1.0 + _erf_f32(x * 0.7071067811865476))


def _layernorm(y, gamma, beta, eps):
    mu = jnp.mean(y, axis=-1, keepdims=True)
    var = jnp.mean(jnp.square(y - mu), axis=-1, keepdims=True)
    return (y - mu) * jax.lax.rsqrt(var + eps) * gamma + beta


# ------------------------------ plain matmul ----------------------------------
def _mm_kernel(x_ref, w_ref, o_ref, acc_ref):
    k = pl.program_id(2)

    @pl.when(k == 0)
    def _():
        acc_ref[...] = jnp.zeros_like(acc_ref)

    acc_ref[...] += jnp.dot(x_ref[...], w_ref[...],
                            preferred_element_type=jnp.float32)

    @pl.when(k == pl.num_programs(2) - 1)
    def _():
        o_ref[...] = acc_ref[...].astype(o_ref.dtype)


def matmul(x, w, *, out_dtype=None, tm=256, tn=512, tk=512):
    M, K = x.shape
    _, N = w.shape
    out_dtype = out_dtype or x.dtype
    tm = _divisor_tile(M, tm, _sublane(x.dtype))
    tn = _divisor_tile(N, tn, 128)
    tk = _divisor_tile(K, tk, 128)
    grid = (M // tm, N // tn, K // tk)
    return pl.pallas_call(
        _mm_kernel,
        out_shape=jax.ShapeDtypeStruct((M, N), out_dtype),
        grid=grid,
        in_specs=[pl.BlockSpec((tm, tk), lambda i, j, k: (i, k)),
                  pl.BlockSpec((tk, tn), lambda i, j, k: (k, j))],
        out_specs=pl.BlockSpec((tm, tn), lambda i, j, k: (i, j)),
        scratch_shapes=[pltpu.VMEM((tm, tn), jnp.float32)],
        compiler_params=_cparams(("parallel", "parallel", "arbitrary")),
    )(x, w)


# -------------------- matmul + bias + (x + dropout(x)) + LayerNorm ------------
def _mm_scale_ln_kernel(x_ref, w_ref, b_ref, g_ref, bb_ref, o_ref, acc_ref, *,
                        scale, eps):
    k = pl.program_id(1)

    @pl.when(k == 0)
    def _():
        acc_ref[...] = jnp.zeros_like(acc_ref)

    acc_ref[...] += jnp.dot(x_ref[...], w_ref[...],
                            preferred_element_type=jnp.float32)

    @pl.when(k == pl.num_programs(1) - 1)
    def _():
        # y = lin(x); y = y + dropout(y) == scale*y (eval); then LayerNorm(D).
        y = (acc_ref[...] + b_ref[...].astype(jnp.float32)) * scale
        o_ref[...] = _layernorm(y, g_ref[...].astype(jnp.float32),
                                bb_ref[...].astype(jnp.float32),
                                eps).astype(o_ref.dtype)


def matmul_scale_ln(x, w, b, gamma, beta, *, scale=2.0, eps=_LN_EPS,
                    out_dtype=None, tm=None, tk=512):
    M, K = x.shape
    _, N = w.shape            # LayerNorm width -> full output width per block
    out_dtype = out_dtype or x.dtype
    if tm is None:            # full-width (tm, N) epilogue: smaller rows on 64 MiB parts
        tm = 128 if _VMEM_CAP <= 64 * 1024 * 1024 else 256
    tm = _divisor_tile(M, tm, _sublane(x.dtype))
    tk = _divisor_tile(K, tk, 128)
    grid = (M // tm, K // tk)
    return pl.pallas_call(
        functools.partial(_mm_scale_ln_kernel, scale=scale, eps=eps),
        out_shape=jax.ShapeDtypeStruct((M, N), out_dtype),
        grid=grid,
        in_specs=[pl.BlockSpec((tm, tk), lambda i, k: (i, k)),
                  pl.BlockSpec((tk, N), lambda i, k: (k, 0)),
                  pl.BlockSpec((1, N), lambda i, k: (0, 0)),
                  pl.BlockSpec((1, N), lambda i, k: (0, 0)),
                  pl.BlockSpec((1, N), lambda i, k: (0, 0))],
        out_specs=pl.BlockSpec((tm, N), lambda i, k: (i, 0)),
        scratch_shapes=[pltpu.VMEM((tm, N), jnp.float32)],
        compiler_params=_cparams(("parallel", "arbitrary")),
    )(x, w, b, gamma, beta)


# --------------------------- matmul + fused GEGLU ------------------------------
def _mm_geglu_kernel(x_ref, wa_ref, wg_ref, ba_ref, bg_ref, o_ref, acc_a, acc_g):
    k = pl.program_id(2)

    @pl.when(k == 0)
    def _():
        acc_a[...] = jnp.zeros_like(acc_a)
        acc_g[...] = jnp.zeros_like(acc_g)

    xb = x_ref[...]
    acc_a[...] += jnp.dot(xb, wa_ref[...], preferred_element_type=jnp.float32)
    acc_g[...] += jnp.dot(xb, wg_ref[...], preferred_element_type=jnp.float32)

    @pl.when(k == pl.num_programs(2) - 1)
    def _():
        a = acc_a[...] + ba_ref[...].astype(jnp.float32)
        g = acc_g[...] + bg_ref[...].astype(jnp.float32)
        o_ref[...] = (a * _gelu_exact(g)).astype(o_ref.dtype)


def matmul_geglu(x, wa, wg, ba, bg, *, out_dtype=None, tm=None, tn=512, tk=512):
    M, K = x.shape
    _, N = wa.shape
    out_dtype = out_dtype or x.dtype
    if tm is None:
        tm = 128 if _VMEM_CAP <= 64 * 1024 * 1024 else 256
    tm = _divisor_tile(M, tm, _sublane(x.dtype))
    tn = _divisor_tile(N, tn, 128)
    tk = _divisor_tile(K, tk, 128)
    grid = (M // tm, N // tn, K // tk)
    return pl.pallas_call(
        _mm_geglu_kernel,
        out_shape=jax.ShapeDtypeStruct((M, N), out_dtype),
        grid=grid,
        in_specs=[pl.BlockSpec((tm, tk), lambda i, j, k: (i, k)),
                  pl.BlockSpec((tk, tn), lambda i, j, k: (k, j)),
                  pl.BlockSpec((tk, tn), lambda i, j, k: (k, j)),
                  pl.BlockSpec((1, tn), lambda i, j, k: (0, j)),
                  pl.BlockSpec((1, tn), lambda i, j, k: (0, j))],
        out_specs=pl.BlockSpec((tm, tn), lambda i, j, k: (i, j)),
        scratch_shapes=[pltpu.VMEM((tm, tn), jnp.float32),
                        pltpu.VMEM((tm, tn), jnp.float32)],
        compiler_params=_cparams(("parallel", "parallel", "arbitrary")),
    )(x, wa, wg, ba, bg)


# --------------------------- attention (tiled fallback) ------------------------
def _attn_group_kernel(qkv_ref, o_ref, *, heads_per_block, dim_head):
    cw = heads_per_block * dim_head
    blk = qkv_ref[...]                                 # (seq, 3*cw) bf16, [q | k | v]
    q, k, v = blk[:, :cw], blk[:, cw:2 * cw], blk[:, 2 * cw:]
    outs = []
    for h in range(heads_per_block):                   # small (default 2) -> bounded live set
        sl = slice(h * dim_head, (h + 1) * dim_head)
        # softmax scale is pre-folded into the q weight columns
        s = jax.lax.dot_general(q[:, sl], k[:, sl], (((1,), (1,)), ((), ())),
                                preferred_element_type=jnp.float32)
        m = jnp.max(s, axis=-1, keepdims=True)
        e = jnp.exp(s - m)
        p = e * pl.reciprocal(jnp.sum(e, axis=-1, keepdims=True), approx=True)
        outs.append(jnp.dot(p.astype(jnp.bfloat16), v[:, sl],
                            preferred_element_type=jnp.float32))
    o_ref[...] = jnp.concatenate(outs, axis=-1).astype(o_ref.dtype)   # 128-lane store


def attention(qkv, *, batch, seq, heads, dim_head, heads_per_block=2,
              out_dtype=None):
    # TODO(synk): add flash-style kv blocking (online softmax, kv grid axis
    # marked "arbitrary") before using this with long sequences; currently the
    # full (seq, seq) score matrix per head is materialized in VMEM.
    rows, width = qkv.shape
    inner = heads * dim_head
    out_dtype = out_dtype or qkv.dtype
    assert rows == batch * seq and width == 3 * inner
    assert heads % heads_per_block == 0
    cw = heads_per_block * dim_head
    assert cw % 128 == 0, "head-group width must be lane-dense (multiple of 128)"
    n_groups = heads // heads_per_block
    kernel = functools.partial(_attn_group_kernel,
                               heads_per_block=heads_per_block, dim_head=dim_head)
    return pl.pallas_call(
        kernel,
        out_shape=jax.ShapeDtypeStruct((rows, inner), out_dtype),
        grid=(batch, n_groups),
        # single DMA stream: q|k|v for a head group are contiguous columns of
        # the group-interleaved fused qkv buffer
        in_specs=[pl.BlockSpec((seq, 3 * cw), lambda b, g: (b, g))],
        out_specs=pl.BlockSpec((seq, cw), lambda b, g: (b, g)),
        compiler_params=_cparams(("parallel", "parallel")),
    )(qkv)


# --------------------- fully-fused single-launch layer kernel ------------------
def _fused_layer_kernel(x_ref, wq_ref, wk_ref, wv_ref, wo_ref, bo_ref,
                        g1_ref, beta1_ref, wa_ref, wg_ref, ba_ref, bg_ref,
                        w2_ref, bff2_ref, g2_ref, beta2_ref, o_ref, *, eps):
    xb = x_ref[...]                                    # (seq, D) bf16
    seq, D = xb.shape
    heads = wq_ref.shape[0]

    # ---- attention over the full seq of this batch (scale folded into wq) ----
    def head_step(h, acc):
        qh = jnp.dot(xb, wq_ref[h], preferred_element_type=jnp.float32)
        kh = jnp.dot(xb, wk_ref[h], preferred_element_type=jnp.float32)
        vh = jnp.dot(xb, wv_ref[h], preferred_element_type=jnp.float32)
        s = jax.lax.dot_general(qh.astype(jnp.bfloat16), kh.astype(jnp.bfloat16),
                                (((1,), (1,)), ((), ())),
                                preferred_element_type=jnp.float32)     # (seq, seq)
        m = jnp.max(s, axis=-1, keepdims=True)
        e = jnp.exp(s - m)
        p = e * pl.reciprocal(jnp.sum(e, axis=-1, keepdims=True), approx=True)
        oh = jnp.dot(p.astype(jnp.bfloat16), vh.astype(jnp.bfloat16),
                     preferred_element_type=jnp.float32)                # (seq, dh)
        # fold each head straight into the to_out projection: the 'b n (h d)'
        # concatenation is never materialized
        return acc + jnp.dot(oh.astype(jnp.bfloat16), wo_ref[h],
                             preferred_element_type=jnp.float32)

    att = jax.lax.fori_loop(0, heads, head_step,
                            jnp.zeros((seq, D), jnp.float32))

    # ---- to_out bias, x + dropout(x) == 2x (eval), LayerNorm ----
    y = (att + bo_ref[...].astype(jnp.float32)) * 2.0
    x1 = _layernorm(y, g1_ref[...].astype(jnp.float32),
                    beta1_ref[...].astype(jnp.float32), eps)
    x1b = x1.astype(jnp.bfloat16)

    # ---- FeedForward: Linear(D,8D) + GEGLU, Linear(4D,D), 2x, LayerNorm ----
    a = jnp.dot(x1b, wa_ref[...], preferred_element_type=jnp.float32) \
        + ba_ref[...].astype(jnp.float32)
    g = jnp.dot(x1b, wg_ref[...], preferred_element_type=jnp.float32) \
        + bg_ref[...].astype(jnp.float32)
    h = (a * _gelu_exact(g)).astype(jnp.bfloat16)

    z = jnp.dot(h, w2_ref[...], preferred_element_type=jnp.float32)
    z = (z + bff2_ref[...].astype(jnp.float32)) * 2.0
    x2 = _layernorm(z, g2_ref[...].astype(jnp.float32),
                    beta2_ref[...].astype(jnp.float32), eps)
    o_ref[...] = x2.astype(o_ref.dtype)


_FUSED_PARAM_KEYS = ("wq", "wk", "wv", "wo_h", "bo", "g1", "b1",
                     "wff1_a", "wff1_g", "bff1_a", "bff1_g",
                     "wff2", "bff2", "g2", "b2")


def _const_spec(arr):
    zeros = (0,) * arr.ndim
    return pl.BlockSpec(arr.shape, lambda b: zeros)


def fused_transformer_layer(xf, kp, *, batch, seq, eps=_LN_EPS,
                            out_dtype=jnp.float32):
    rows, D = xf.shape
    assert rows == batch * seq
    weights = [kp[k] for k in _FUSED_PARAM_KEYS]
    return pl.pallas_call(
        functools.partial(_fused_layer_kernel, eps=eps),
        out_shape=jax.ShapeDtypeStruct((rows, D), out_dtype),
        grid=(batch,),
        in_specs=[pl.BlockSpec((seq, D), lambda b: (b, 0))]
                 + [_const_spec(w) for w in weights],
        out_specs=pl.BlockSpec((seq, D), lambda b: (b, 0)),
        compiler_params=_cparams(("parallel",)),
    )(xf, *weights)


def _fused_layer_fits(seq, D, ff_dim, kp):
    wbytes = sum(kp[k].size * kp[k].dtype.itemsize for k in _FUSED_PARAM_KEYS)
    # rough per-step working set: x/out blocks (double-buffered) + f32 temporaries
    act = 4 * seq * D * 4 + 6 * seq * ff_dim * 4 + 4 * seq * seq * 4
    return 2 * wbytes + act <= _VMEM_LIMIT // 2


# --------------------------------- parameters ---------------------------------
def init_params(key, dmodel, modalities, heads=8, dim_head=64, mult=4):
    """Canonical float32 parameters in math orientation (in, out).

    NOTE: a real torch checkpoint stores nn.Linear weights as (out, in) and
    computes x @ W.T -- transpose when loading, and split to_q / to_kv / to_out
    into the per-head layout used here."""
    D = dmodel * modalities
    inner = heads * dim_head
    ks = jax.random.split(key, 9)
    s = 0.02

    def w(k, shape):
        return s * jax.random.normal(k, shape, jnp.float32)

    return {
        "wq": w(ks[0], (heads, D, dim_head)),
        "wk": w(ks[1], (heads, D, dim_head)),
        "wv": w(ks[2], (heads, D, dim_head)),
        "wo": w(ks[3], (inner, D)),
        "bo": w(ks[4], (D,)),
        "ln1_g": jnp.ones((D,), jnp.float32),
        "ln1_b": jnp.zeros((D,), jnp.float32),
        "wff1": w(ks[5], (D, 2 * mult * D)),
        "bff1": w(ks[6], (2 * mult * D,)),
        "wff2": w(ks[7], (mult * D, D)),
        "bff2": w(ks[8], (D,)),
        "ln2_g": jnp.ones((D,), jnp.float32),
        "ln2_b": jnp.zeros((D,), jnp.float32),
    }


def prepare_kernel_params(p, *, heads=8, dim_head=64, heads_per_block=2):
    """Kernel-ready operands: bf16 weights, softmax scale folded into wq, and a
    head-group-interleaved fused qkv projection weight for the tiled path."""
    H, D, dh = p["wq"].shape
    assert H == heads and dh == dim_head
    inner = H * dh
    ffh = p["wff2"].shape[0]                     # mult * D
    scale = dh ** -0.5

    wq_s = (p["wq"] * scale).astype(jnp.bfloat16)
    wk_b = p["wk"].astype(jnp.bfloat16)
    wv_b = p["wv"].astype(jnp.bfloat16)

    assert heads % heads_per_block == 0
    G, cw = heads // heads_per_block, heads_per_block * dh

    def gcols(w):                                # (H, D, dh) -> (G, D, cw)
        return w.reshape(G, heads_per_block, D, dh).transpose(0, 2, 1, 3).reshape(G, D, cw)

    wqkv = jnp.concatenate([gcols(wq_s), gcols(wk_b), gcols(wv_b)], axis=-1)
    wqkv = wqkv.transpose(1, 0, 2).reshape(D, 3 * inner)   # per-group [q | k | v] columns

    return {
        "wq": wq_s, "wk": wk_b, "wv": wv_b,                 # fused path (per head)
        "wqkv": wqkv,                                       # tiled path (fused projection)
        "wo_h": p["wo"].reshape(H, dh, D).astype(jnp.bfloat16),
        "wo": p["wo"].astype(jnp.bfloat16),
        "bo": p["bo"].reshape(1, D).astype(jnp.float32),
        "g1": p["ln1_g"].reshape(1, D).astype(jnp.float32),
        "b1": p["ln1_b"].reshape(1, D).astype(jnp.float32),
        "wff1_a": p["wff1"][:, :ffh].astype(jnp.bfloat16),
        "wff1_g": p["wff1"][:, ffh:].astype(jnp.bfloat16),
        "bff1_a": p["bff1"][:ffh].reshape(1, ffh).astype(jnp.float32),
        "bff1_g": p["bff1"][ffh:].reshape(1, ffh).astype(jnp.float32),
        "wff2": p["wff2"].astype(jnp.bfloat16),
        "bff2": p["bff2"].reshape(1, D).astype(jnp.float32),
        "g2": p["ln2_g"].reshape(1, D).astype(jnp.float32),
        "b2": p["ln2_b"].reshape(1, D).astype(jnp.float32),
    }


# --------------------------------- full forward --------------------------------
def transformer_layer(x, kp, *, heads=8, dim_head=64, heads_per_block=2,
                      force_tiled=False, eps=_LN_EPS):
    # x: [B, dmodel, modalities, seq]
    B, dm, M, N = x.shape
    D = dm * M
    # mirrors torch: permute(0,3,2,1).flatten(2,3) -> (B*N, D); bf16 at the HBM boundary
    xf = jnp.transpose(x, (0, 3, 2, 1)).reshape(B * N, D).astype(jnp.bfloat16)

    ff_dim = kp["wff1_a"].shape[1]
    if not force_tiled and _fused_layer_fits(N, D, ff_dim, kp):
        x2 = fused_transformer_layer(xf, kp, batch=B, seq=N, eps=eps,
                                     out_dtype=x.dtype)
    else:
        # ---- tiled fallback (large shapes); all HBM intermediates are bf16 ----
        qkv = matmul(xf, kp["wqkv"], out_dtype=jnp.bfloat16)          # (B*N, 3*inner)
        o = attention(qkv, batch=B, seq=N, heads=heads, dim_head=dim_head,
                      heads_per_block=heads_per_block,
                      out_dtype=jnp.bfloat16)                         # (B*N, inner)
        x1 = matmul_scale_ln(o, kp["wo"], kp["bo"], kp["g1"], kp["b1"],
                             scale=2.0, eps=eps, out_dtype=jnp.bfloat16)
        gg = matmul_geglu(x1, kp["wff1_a"], kp["wff1_g"],
                          kp["bff1_a"], kp["bff1_g"], out_dtype=jnp.bfloat16)
        x2 = matmul_scale_ln(gg, kp["wff2"], kp["bff2"], kp["g2"], kp["b2"],
                             scale=2.0, eps=eps, out_dtype=x.dtype)
    # mirrors torch .view(x_shape) on the contiguous (B, N, D) result
    return x2.reshape(x.shape)


# ------------------------------ pure-JAX reference ------------------------------
def reference_forward(x, p, *, heads=8, dim_head=64, eps=_LN_EPS):
    B, dm, M, N = x.shape
    D = dm * M
    inner = heads * dim_head
    xf = jnp.transpose(x, (0, 3, 2, 1)).reshape(B, N, D).astype(jnp.float32)

    def flat(w):                                  # (H, D, dh) -> (D, inner), 'b n (h d)'
        return jnp.transpose(w, (1, 0, 2)).reshape(D, inner)

    q = xf @ flat(p["wq"])
    k = xf @ flat(p["wk"])
    v = xf @ flat(p["wv"])

    def split(t):                                 # (B, N, inner) -> (B, H, N, dh)
        return t.reshape(B, N, heads, dim_head).transpose(0, 2, 1, 3)

    q, k, v = split(q), split(k), split(v)
    sim = jnp.einsum("bhid,bhjd->bhij", q, k) * (dim_head ** -0.5)
    attn = jax.nn.softmax(sim, axis=-1)
    o = jnp.einsum("bhij,bhjd->bhid", attn, v)
    o = o.transpose(0, 2, 1, 3).reshape(B, N, inner)

    def ln(t, g, b):
        mu = jnp.mean(t, axis=-1, keepdims=True)
        var = jnp.mean(jnp.square(t - mu), axis=-1, keepdims=True)
        return (t - mu) * jax.lax.rsqrt(var + eps) * g + b

    y = (o @ p["wo"] + p["bo"]) * 2.0             # x + dropout(x) == 2x in eval
    x1 = ln(y, p["ln1_g"], p["ln1_b"])

    h = x1 @ p["wff1"] + p["bff1"]
    ffh = p["wff2"].shape[0]
    a, g = h[..., :ffh], h[..., ffh:]
    hh = a * jax.nn.gelu(g, approximate=False)
    z = (hh @ p["wff2"] + p["bff2"]) * 2.0
    x2 = ln(z, p["ln2_g"], p["ln2_b"])
    return x2.reshape(x.shape)


if __name__ == "__main__":
    B, dmodel, modalities, seq = 2, 32, 4, 16        # D = 128, inner = 512, rows = 32
    heads, dim_head = 8, 64
    key = jax.random.PRNGKey(0)
    kx, kw = jax.random.split(key)
    x = jax.random.normal(kx, (B, dmodel, modalities, seq), jnp.float32)

    params = init_params(kw, dmodel, modalities, heads=heads, dim_head=dim_head)
    kparams = prepare_kernel_params(params, heads=heads, dim_head=dim_head,
                                    heads_per_block=2)

    fwd_fused = jax.jit(functools.partial(transformer_layer, heads=heads,
                                          dim_head=dim_head, heads_per_block=2))
    fwd_tiled = jax.jit(functools.partial(transformer_layer, heads=heads,
                                          dim_head=dim_head, heads_per_block=2,
                                          force_tiled=True))

    out = fwd_fused(x, kparams)           # fully-fused single-launch path
    out_tiled = fwd_tiled(x, kparams)     # exercises the tiled multi-kernel path too
    jax.block_until_ready((out, out_tiled))

    assert out.shape == x.shape and out.dtype == x.dtype
    assert bool(jnp.all(jnp.isfinite(out))) and bool(jnp.all(jnp.isfinite(out_tiled)))

    # fused vs tiled Pallas paths share the same bf16 rounding points -> tight
    assert bool(jnp.allclose(out, out_tiled, atol=2e-2, rtol=2e-2))
    # pure-JAX f32 reference -> loose tolerance (bf16 MXU operands, approx erf/recip)
    ref = reference_forward(x, params, heads=heads, dim_head=dim_head)
    assert bool(jnp.allclose(out, ref, atol=0.1, rtol=0.1))
    assert bool(jnp.allclose(out_tiled, ref, atol=0.1, rtol=0.1))

    print("KERNEL_OK")
</pallas_src>

<mosaic_0001>
module attributes {stable_mosaic.version = 11 : i64} {
  func.func @_fused_layer_kernel(%arg0: i32, %arg1: memref<16x128xbf16, #tpu.memory_space<vmem>>, %arg2: memref<8x128x64xbf16, #tpu.memory_space<vmem>>, %arg3: memref<8x128x64xbf16, #tpu.memory_space<vmem>>, %arg4: memref<8x128x64xbf16, #tpu.memory_space<vmem>>, %arg5: memref<8x64x128xbf16, #tpu.memory_space<vmem>>, %arg6: memref<1x128xf32, #tpu.memory_space<vmem>>, %arg7: memref<1x128xf32, #tpu.memory_space<vmem>>, %arg8: memref<1x128xf32, #tpu.memory_space<vmem>>, %arg9: memref<128x512xbf16, #tpu.memory_space<vmem>>, %arg10: memref<128x512xbf16, #tpu.memory_space<vmem>>, %arg11: memref<1x512xf32, #tpu.memory_space<vmem>>, %arg12: memref<1x512xf32, #tpu.memory_space<vmem>>, %arg13: memref<512x128xbf16, #tpu.memory_space<vmem>>, %arg14: memref<1x128xf32, #tpu.memory_space<vmem>>, %arg15: memref<1x128xf32, #tpu.memory_space<vmem>>, %arg16: memref<1x128xf32, #tpu.memory_space<vmem>>, %arg17: memref<16x128xf32, #tpu.memory_space<vmem>>) attributes {dimension_semantics = [#tpu.dimension_semantics<parallel>], iteration_bounds = array<i64: 2>, scalar_prefetch = 0 : i64, scratch_operands = 0 : i64, tpu.core_type = #tpu.core_type<tc>, window_params = [{transform_indices = @transform_0, window_bounds = array<i64: 16, 128>}, {pipeline_mode = #tpu.pipeline_mode<synchronous>, transform_indices = @transform_1, window_bounds = array<i64: 8, 128, 64>}, {pipeline_mode = #tpu.pipeline_mode<synchronous>, transform_indices = @transform_2, window_bounds = array<i64: 8, 128, 64>}, {pipeline_mode = #tpu.pipeline_mode<synchronous>, transform_indices = @transform_3, window_bounds = array<i64: 8, 128, 64>}, {pipeline_mode = #tpu.pipeline_mode<synchronous>, transform_indices = @transform_4, window_bounds = array<i64: 8, 64, 128>}, {pipeline_mode = #tpu.pipeline_mode<synchronous>, transform_indices = @transform_5, window_bounds = array<i64: 1, 128>}, {pipeline_mode = #tpu.pipeline_mode<synchronous>, transform_indices = @transform_6, window_bounds = array<i64: 1, 128>}, {pipeline_mode = #tpu.pipeline_mode<synchronous>, transform_indices = @transform_7, window_bounds = array<i64: 1, 128>}, {pipeline_mode = #tpu.pipeline_mode<synchronous>, transform_indices = @transform_8, window_bounds = array<i64: 128, 512>}, {pipeline_mode = #tpu.pipeline_mode<synchronous>, transform_indices = @transform_9, window_bounds = array<i64: 128, 512>}, {pipeline_mode = #tpu.pipeline_mode<synchronous>, transform_indices = @transform_10, window_bounds = array<i64: 1, 512>}, {pipeline_mode = #tpu.pipeline_mode<synchronous>, transform_indices = @transform_11, window_bounds = array<i64: 1, 512>}, {pipeline_mode = #tpu.pipeline_mode<synchronous>, transform_indices = @transform_12, window_bounds = array<i64: 512, 128>}, {pipeline_mode = #tpu.pipeline_mode<synchronous>, transform_indices = @transform_13, window_bounds = array<i64: 1, 128>}, {pipeline_mode = #tpu.pipeline_mode<synchronous>, transform_indices = @transform_14, window_bounds = array<i64: 1, 128>}, {pipeline_mode = #tpu.pipeline_mode<synchronous>, transform_indices = @transform_15, window_bounds = array<i64: 1, 128>}, {transform_indices = @transform_16, window_bounds = array<i64: 16, 128>}]} {
    %c0 = arith.constant 0 : index
    %c0_0 = arith.constant 0 : index
    %0 = vector.load %arg1[%c0, %c0_0] : memref<16x128xbf16, #tpu.memory_space<vmem>>, vector<16x128xbf16>
    %cst = arith.constant 0.000000e+00 : f32
    %1 = vector.broadcast %cst : f32 to vector<16x128xf32>
    %c0_i32 = arith.constant 0 : i32
    %c8_i32 = arith.constant 8 : i32
    %2 = arith.addi %c0_i32, %c8_i32 : i32
    %c1_i32 = arith.constant 1 : i32
    %3 = scf.for %arg18 = %c0_i32 to %2 step %c1_i32 iter_args(%arg19 = %1) -> (vector<16x128xf32>)  : i32 {
      %117 = arith.index_cast %arg18 : i32 to index
      %c0_55 = arith.constant 0 : index
      %c0_56 = arith.constant 0 : index
      %118 = vector.load %arg2[%117, %c0_55, %c0_56] : memref<8x128x64xbf16, #tpu.memory_space<vmem>>, vector<1x128x64xbf16>
      %119 = vector.shape_cast %118 : vector<1x128x64xbf16> to vector<128x64xbf16>
      %cst_57 = arith.constant dense<0.000000e+00> : vector<16x64xf32>
      %120 = tpu.matmul %0, %119, %cst_57 {dimension_numbers = #tpu.dot_dimension_numbers<[1], [0], [0], [1], [0, 0, 1, 1], [], []>} : vector<16x128xbf16>, vector<128x64xbf16>, vector<16x64xf32> -> vector<16x64xf32>
      %121 = arith.index_cast %arg18 : i32 to index
      %c0_58 = arith.constant 0 : index
      %c0_59 = arith.constant 0 : index
      %122 = vector.load %arg3[%121, %c0_58, %c0_59] : memref<8x128x64xbf16, #tpu.memory_space<vmem>>, vector<1x128x64xbf16>
      %123 = vector.shape_cast %122 : vector<1x128x64xbf16> to vector<128x64xbf16>
      %cst_60 = arith.constant dense<0.000000e+00> : vector<16x64xf32>
      %124 = tpu.matmul %0, %123, %cst_60 {dimension_numbers = #tpu.dot_dimension_numbers<[1], [0], [0], [1], [0, 0, 1, 1], [], []>} : vector<16x128xbf16>, vector<128x64xbf16>, vector<16x64xf32> -> vector<16x64xf32>
      %125 = arith.index_cast %arg18 : i32 to index
      %c0_61 = arith.constant 0 : index
      %c0_62 = arith.constant 0 : index
      %126 = vector.load %arg4[%125, %c0_61, %c0_62] : memref<8x128x64xbf16, #tpu.memory_space<vmem>>, vector<1x128x64xbf16>
      %127 = vector.shape_cast %126 : vector<1x128x64xbf16> to vector<128x64xbf16>
      %cst_63 = arith.constant dense<0.000000e+00> : vector<16x64xf32>
      %128 = tpu.matmul %0, %127, %cst_63 {dimension_numbers = #tpu.dot_dimension_numbers<[1], [0], [0], [1], [0, 0, 1, 1], [], []>} : vector<16x128xbf16>, vector<128x64xbf16>, vector<16x64xf32> -> vector<16x64xf32>
      %129 = arith.truncf %120 : vector<16x64xf32> to vector<16x64xbf16>
      %130 = arith.truncf %124 : vector<16x64xf32> to vector<16x64xbf16>
      %cst_64 = arith.constant dense<0.000000e+00> : vector<16x16xf32>
      %131 = tpu.matmul %129, %130, %cst_64 {dimension_numbers = #tpu.dot_dimension_numbers<[1], [1], [0], [0], [0, 0, 1, 0], [], []>} : vector<16x64xbf16>, vector<16x64xbf16>, vector<16x16xf32> -> vector<16x16xf32>
      %cst_65 = arith.constant dense<0xFF800000> : vector<16xf32>
      %132 = vector.multi_reduction <maximumf>, %131, %cst_65 [1] : vector<16x16xf32> to vector<16xf32>
      %133 = vector.shape_cast %132 : vector<16xf32> to vector<16x1xf32>
      %134 = vector.broadcast %133 : vector<16x1xf32> to vector<16x16xf32>
      %135 = arith.subf %131, %134 : vector<16x16xf32>
      %136 = math.exp %135 : vector<16x16xf32>
      %cst_66 = arith.constant dense<0.000000e+00> : vector<16xf32>
      %137 = vector.multi_reduction <add>, %136, %cst_66 [1] : vector<16x16xf32> to vector<16xf32>
      %138 = vector.shape_cast %137 : vector<16xf32> to vector<16x1xf32>
      %139 = tpu.reciprocal %138 {approx = true} : vector<16x1xf32> -> vector<16x1xf32>
      %140 = vector.broadcast %139 : vector<16x1xf32> to vector<16x16xf32>
      %141 = arith.mulf %136, %140 : vector<16x16xf32>
      %142 = arith.truncf %141 : vector<16x16xf32> to vector<16x16xbf16>
      %143 = arith.truncf %128 : vector<16x64xf32> to vector<16x64xbf16>
      %cst_67 = arith.constant dense<0.000000e+00> : vector<16x64xf32>
      %144 = tpu.matmul %142, %143, %cst_67 {dimension_numbers = #tpu.dot_dimension_numbers<[1], [0], [0], [1], [0, 0, 1, 1], [], []>} : vector<16x16xbf16>, vector<16x64xbf16>, vector<16x64xf32> -> vector<16x64xf32>
      %145 = arith.truncf %144 : vector<16x64xf32> to vector<16x64xbf16>
      %146 = arith.index_cast %arg18 : i32 to index
      %c0_68 = arith.constant 0 : index
      %c0_69 = arith.constant 0 : index
      %147 = vector.load %arg5[%146, %c0_68, %c0_69] : memref<8x64x128xbf16, #tpu.memory_space<vmem>>, vector<1x64x128xbf16>
      %148 = vector.shape_cast %147 : vector<1x64x128xbf16> to vector<64x128xbf16>
      %cst_70 = arith.constant dense<0.000000e+00> : vector<16x128xf32>
      %149 = tpu.matmul %145, %148, %cst_70 {dimension_numbers = #tpu.dot_dimension_numbers<[1], [0], [0], [1], [0, 0, 1, 1], [], []>} : vector<16x64xbf16>, vector<64x128xbf16>, vector<16x128xf32> -> vector<16x128xf32>
      %150 = arith.addf %arg19, %149 : vector<16x128xf32>
      scf.yield %150 : vector<16x128xf32>
    }
    %c8_i32_1 = arith.constant 8 : i32
    %c0_2 = arith.constant 0 : index
    %c0_3 = arith.constant 0 : index
    %4 = vector.load %arg6[%c0_2, %c0_3] : memref<1x128xf32, #tpu.memory_space<vmem>>, vector<1x128xf32>
    %5 = vector.broadcast %4 : vector<1x128xf32> to vector<16x128xf32>
    %6 = arith.addf %3, %5 : vector<16x128xf32>
    %cst_4 = arith.constant 2.000000e+00 : f32
    %7 = vector.broadcast %cst_4 : f32 to vector<16x128xf32>
    %8 = arith.mulf %6, %7 : vector<16x128xf32>
    %c0_5 = arith.constant 0 : index
    %c0_6 = arith.constant 0 : index
    %9 = vector.load %arg7[%c0_5, %c0_6] : memref<1x128xf32, #tpu.memory_space<vmem>>, vector<1x128xf32>
    %c0_7 = arith.constant 0 : index
    %c0_8 = arith.constant 0 : index
    %10 = vector.load %arg8[%c0_7, %c0_8] : memref<1x128xf32, #tpu.memory_space<vmem>>, vector<1x128xf32>
    %cst_9 = arith.constant dense<0.000000e+00> : vector<16xf32>
    %11 = vector.multi_reduction <add>, %8, %cst_9 [1] : vector<16x128xf32> to vector<16xf32>
    %12 = vector.shape_cast %11 : vector<16xf32> to vector<16x1xf32>
    %cst_10 = arith.constant 1.280000e+02 : f32
    %13 = vector.broadcast %cst_10 : f32 to vector<16x1xf32>
    %14 = arith.divf %12, %13 : vector<16x1xf32>
    %15 = vector.broadcast %14 : vector<16x1xf32> to vector<16x128xf32>
    %16 = arith.subf %8, %15 : vector<16x128xf32>
    %17 = arith.mulf %16, %16 : vector<16x128xf32>
    %cst_11 = arith.constant dense<0.000000e+00> : vector<16xf32>
    %18 = vector.multi_reduction <add>, %17, %cst_11 [1] : vector<16x128xf32> to vector<16xf32>
    %19 = vector.shape_cast %18 : vector<16xf32> to vector<16x1xf32>
    %cst_12 = arith.constant 1.280000e+02 : f32
    %20 = vector.broadcast %cst_12 : f32 to vector<16x1xf32>
    %21 = arith.divf %19, %20 : vector<16x1xf32>
    %22 = vector.broadcast %14 : vector<16x1xf32> to vector<16x128xf32>
    %23 = arith.subf %8, %22 : vector<16x128xf32>
    %cst_13 = arith.constant 9.99999974E-6 : f32
    %24 = vector.broadcast %cst_13 : f32 to vector<16x1xf32>
    %25 = arith.addf %21, %24 : vector<16x1xf32>
    %26 = math.rsqrt %25 : vector<16x1xf32>
    %27 = vector.broadcast %26 : vector<16x1xf32> to vector<16x128xf32>
    %28 = arith.mulf %23, %27 : vector<16x128xf32>
    %29 = vector.broadcast %9 : vector<1x128xf32> to vector<16x128xf32>
    %30 = arith.mulf %28, %29 : vector<16x128xf32>
    %31 = vector.broadcast %10 : vector<1x128xf32> to vector<16x128xf32>
    %32 = arith.addf %30, %31 : vector<16x128xf32>
    %33 = arith.truncf %32 : vector<16x128xf32> to vector<16x128xbf16>
    %c0_14 = arith.constant 0 : index
    %c0_15 = arith.constant 0 : index
    %34 = vector.load %arg9[%c0_14, %c0_15] : memref<128x512xbf16, #tpu.memory_space<vmem>>, vector<128x512xbf16>
    %cst_16 = arith.constant dense<0.000000e+00> : vector<16x512xf32>
    %35 = tpu.matmul %33, %34, %cst_16 {dimension_numbers = #tpu.dot_dimension_numbers<[1], [0], [0], [1], [0, 0, 1, 1], [], []>} : vector<16x128xbf16>, vector<128x512xbf16>, vector<16x512xf32> -> vector<16x512xf32>
    %c0_17 = arith.constant 0 : index
    %c0_18 = arith.constant 0 : index
    %36 = vector.load %arg11[%c0_17, %c0_18] : memref<1x512xf32, #tpu.memory_space<vmem>>, vector<1x512xf32>
    %37 = vector.broadcast %36 : vector<1x512xf32> to vector<16x512xf32>
    %38 = arith.addf %35, %37 : vector<16x512xf32>
    %c0_19 = arith.constant 0 : index
    %c0_20 = arith.constant 0 : index
    %39 = vector.load %arg10[%c0_19, %c0_20] : memref<128x512xbf16, #tpu.memory_space<vmem>>, vector<128x512xbf16>
    %cst_21 = arith.constant dense<0.000000e+00> : vector<16x512xf32>
    %40 = tpu.matmul %33, %39, %cst_21 {dimension_numbers = #tpu.dot_dimension_numbers<[1], [0], [0], [1], [0, 0, 1, 1], [], []>} : vector<16x128xbf16>, vector<128x512xbf16>, vector<16x512xf32> -> vector<16x512xf32>
    %c0_22 = arith.constant 0 : index
    %c0_23 = arith.constant 0 : index
    %41 = vector.load %arg12[%c0_22, %c0_23] : memref<1x512xf32, #tpu.memory_space<vmem>>, vector<1x512xf32>
    %42 = vector.broadcast %41 : vector<1x512xf32> to vector<16x512xf32>
    %43 = arith.addf %40, %42 : vector<16x512xf32>
    %cst_24 = arith.constant 5.000000e-01 : f32
    %44 = vector.broadcast %cst_24 : f32 to vector<16x512xf32>
    %45 = arith.mulf %44, %43 : vector<16x512xf32>
    %cst_25 = arith.constant 0.707106769 : f32
    %46 = vector.broadcast %cst_25 : f32 to vector<16x512xf32>
    %47 = arith.mulf %43, %46 : vector<16x512xf32>
    %48 = math.absf %47 : vector<16x512xf32>
    %cst_26 = arith.constant 0.327591091 : f32
    %49 = vector.broadcast %cst_26 : f32 to vector<16x512xf32>
    %50 = arith.mulf %49, %48 : vector<16x512xf32>
    %cst_27 = arith.constant 1.000000e+00 : f32
    %51 = vector.broadcast %cst_27 : f32 to vector<16x512xf32>
    %52 = arith.addf %51, %50 : vector<16x512xf32>
    %53 = tpu.reciprocal %52 {approx = true} : vector<16x512xf32> -> vector<16x512xf32>
    %cst_28 = arith.constant 1.06140542 : f32
    %54 = vector.broadcast %cst_28 : f32 to vector<16x512xf32>
    %55 = arith.mulf %53, %54 : vector<16x512xf32>
    %cst_29 = arith.constant -1.45315206 : f32
    %56 = vector.broadcast %cst_29 : f32 to vector<16x512xf32>
    %57 = arith.addf %56, %55 : vector<16x512xf32>
    %58 = arith.mulf %53, %57 : vector<16x512xf32>
    %cst_30 = arith.constant 1.42141378 : f32
    %59 = vector.broadcast %cst_30 : f32 to vector<16x512xf32>
    %60 = arith.addf %59, %58 : vector<16x512xf32>
    %61 = arith.mulf %53, %60 : vector<16x512xf32>
    %cst_31 = arith.constant -0.284496725 : f32
    %62 = vector.broadcast %cst_31 : f32 to vector<16x512xf32>
    %63 = arith.addf %62, %61 : vector<16x512xf32>
    %64 = arith.mulf %53, %63 : vector<16x512xf32>
    %cst_32 = arith.constant 0.254829586 : f32
    %65 = vector.broadcast %cst_32 : f32 to vector<16x512xf32>
    %66 = arith.addf %65, %64 : vector<16x512xf32>
    %67 = arith.mulf %53, %66 : vector<16x512xf32>
    %cst_33 = arith.constant 0.000000e+00 : f32
    %68 = vector.broadcast %cst_33 : f32 to vector<16x512xf32>
    %69 = arith.subf %68, %48 : vector<16x512xf32>
    %70 = arith.mulf %69, %48 : vector<16x512xf32>
    %71 = math.exp %70 : vector<16x512xf32>
    %72 = arith.mulf %67, %71 : vector<16x512xf32>
    %cst_34 = arith.constant 1.000000e+00 : f32
    %73 = vector.broadcast %cst_34 : f32 to vector<16x512xf32>
    %74 = arith.subf %73, %72 : vector<16x512xf32>
    %cst_35 = arith.constant 0.000000e+00 : f32
    %75 = vector.broadcast %cst_35 : f32 to vector<16x512xf32>
    %76 = arith.cmpf olt, %47, %75 : vector<16x512xf32>
    %cst_36 = arith.constant 0.000000e+00 : f32
    %77 = vector.broadcast %cst_36 : f32 to vector<16x512xf32>
    %78 = arith.subf %77, %74 : vector<16x512xf32>
    %79 = arith.select %76, %78, %74 : vector<16x512xi1>, vector<16x512xf32>
    %cst_37 = arith.constant 1.000000e+00 : f32
    %80 = vector.broadcast %cst_37 : f32 to vector<16x512xf32>
    %81 = arith.addf %80, %79 : vector<16x512xf32>
    %82 = arith.mulf %45, %81 : vector<16x512xf32>
    %83 = arith.mulf %38, %82 : vector<16x512xf32>
    %84 = arith.truncf %83 : vector<16x512xf32> to vector<16x512xbf16>
    %c0_38 = arith.constant 0 : index
    %c0_39 = arith.constant 0 : index
    %85 = vector.load %arg13[%c0_38, %c0_39] : memref<512x128xbf16, #tpu.memory_space<vmem>>, vector<512x128xbf16>
    %cst_40 = arith.constant dense<0.000000e+00> : vector<16x128xf32>
    %86 = tpu.matmul %84, %85, %cst_40 {dimension_numbers = #tpu.dot_dimension_numbers<[1], [0], [0], [1], [0, 0, 1, 1], [], []>} : vector<16x512xbf16>, vector<512x128xbf16>, vector<16x128xf32> -> vector<16x128xf32>
    %c0_41 = arith.constant 0 : index
    %c0_42 = arith.constant 0 : index
    %87 = vector.load %arg14[%c0_41, %c0_42] : memref<1x128xf32, #tpu.memory_space<vmem>>, vector<1x128xf32>
    %88 = vector.broadcast %87 : vector<1x128xf32> to vector<16x128xf32>
    %89 = arith.addf %86, %88 : vector<16x128xf32>
    %cst_43 = arith.constant 2.000000e+00 : f32
    %90 = vector.broadcast %cst_43 : f32 to vector<16x128xf32>
    %91 = arith.mulf %89, %90 : vector<16x128xf32>
    %c0_44 = arith.constant 0 : index
    %c0_45 = arith.constant 0 : index
    %92 = vector.load %arg15[%c0_44, %c0_45] : memref<1x128xf32, #tpu.memory_space<vmem>>, vector<1x128xf32>
    %c0_46 = arith.constant 0 : index
    %c0_47 = arith.constant 0 : index
    %93 = vector.load %arg16[%c0_46, %c0_47] : memref<1x128xf32, #tpu.memory_space<vmem>>, vector<1x128xf32>
    %cst_48 = arith.constant dense<0.000000e+00> : vector<16xf32>
    %94 = vector.multi_reduction <add>, %91, %cst_48 [1] : vector<16x128xf32> to vector<16xf32>
    %95 = vector.shape_cast %94 : vector<16xf32> to vector<16x1xf32>
    %cst_49 = arith.constant 1.280000e+02 : f32
    %96 = vector.broadcast %cst_49 : f32 to vector<16x1xf32>
    %97 = arith.divf %95, %96 : vector<16x1xf32>
    %98 = vector.broadcast %97 : vector<16x1xf32> to vector<16x128xf32>
    %99 = arith.subf %91, %98 : vector<16x128xf32>
    %100 = arith.mulf %99, %99 : vector<16x128xf32>
    %cst_50 = arith.constant dense<0.000000e+00> : vector<16xf32>
    %101 = vector.multi_reduction <add>, %100, %cst_50 [1] : vector<16x128xf32> to vector<16xf32>
    %102 = vector.shape_cast %101 : vector<16xf32> to vector<16x1xf32>
    %cst_51 = arith.constant 1.280000e+02 : f32
    %103 = vector.broadcast %cst_51 : f32 to vector<16x1xf32>
    %104 = arith.divf %102, %103 : vector<16x1xf32>
    %105 = vector.broadcast %97 : vector<16x1xf32> to vector<16x128xf32>
    %106 = arith.subf %91, %105 : vector<16x128xf32>
    %cst_52 = arith.constant 9.99999974E-6 : f32
    %107 = vector.broadcast %cst_52 : f32 to vector<16x1xf32>
    %108 = arith.addf %104, %107 : vector<16x1xf32>
    %109 = math.rsqrt %108 : vector<16x1xf32>
    %110 = vector.broadcast %109 : vector<16x1xf32> to vector<16x128xf32>
    %111 = arith.mulf %106, %110 : vector<16x128xf32>
    %112 = vector.broadcast %92 : vector<1x128xf32> to vector<16x128xf32>
    %113 = arith.mulf %111, %112 : vector<16x128xf32>
    %114 = vector.broadcast %93 : vector<1x128xf32> to vector<16x128xf32>
    %115 = arith.addf %113, %114 : vector<16x128xf32>
    %c0_53 = arith.constant 0 : index
    %c0_54 = arith.constant 0 : index
    %116 = vector.load %arg17[%c0_53, %c0_54] : memref<16x128xf32, #tpu.memory_space<vmem>>, vector<16x128xf32>
    tpu.vector_store %arg17[%c0_53, %c0_54], %115 {strides = array<i32>} : memref<16x128xf32, #tpu.memory_space<vmem>>, vector<16x128xf32>,
    return
  }
  func.func @transform_0(%arg0: i32) -> (i32, i32) {
    %c0_i32 = arith.constant 0 : i32
    %c0_i32_0 = arith.constant 0 : i32
    return %arg0, %c0_i32 : i32, i32
  }
  func.func @transform_1(%arg0: i32) -> (i32, i32, i32) {
    %c0_i32 = arith.constant 0 : i32
    %c0_i32_0 = arith.constant 0 : i32
    %c0_i32_1 = arith.constant 0 : i32
    %c0_i32_2 = arith.constant 0 : i32
    return %c0_i32, %c0_i32_0, %c0_i32_1 : i32, i32, i32
  }
  func.func @transform_2(%arg0: i32) -> (i32, i32, i32) {
    %c0_i32 = arith.constant 0 : i32
    %c0_i32_0 = arith.constant 0 : i32
    %c0_i32_1 = arith.constant 0 : i32
    %c0_i32_2 = arith.constant 0 : i32
    return %c0_i32, %c0_i32_0, %c0_i32_1 : i32, i32, i32
  }
  func.func @transform_3(%arg0: i32) -> (i32, i32, i32) {
    %c0_i32 = arith.constant 0 : i32
    %c0_i32_0 = arith.constant 0 : i32
    %c0_i32_1 = arith.constant 0 : i32
    %c0_i32_2 = arith.constant 0 : i32
    return %c0_i32, %c0_i32_0, %c0_i32_1 : i32, i32, i32
  }
  func.func @transform_4(%arg0: i32) -> (i32, i32, i32) {
    %c0_i32 = arith.constant 0 : i32
    %c0_i32_0 = arith.constant 0 : i32
    %c0_i32_1 = arith.constant 0 : i32
    %c0_i32_2 = arith.constant 0 : i32
    return %c0_i32, %c0_i32_0, %c0_i32_1 : i32, i32, i32
  }
  func.func @transform_5(%arg0: i32) -> (i32, i32) {
    %c0_i32 = arith.constant 0 : i32
    %c0_i32_0 = arith.constant 0 : i32
    %c0_i32_1 = arith.constant 0 : i32
    return %c0_i32, %c0_i32_0 : i32, i32
  }
  func.func @transform_6(%arg0: i32) -> (i32, i32) {
    %c0_i32 = arith.constant 0 : i32
    %c0_i32_0 = arith.constant 0 : i32
    %c0_i32_1 = arith.constant 0 : i32
    return %c0_i32, %c0_i32_0 : i32, i32
  }
  func.func @transform_7(%arg0: i32) -> (i32, i32) {
    %c0_i32 = arith.constant 0 : i32
    %c0_i32_0 = arith.constant 0 : i32
    %c0_i32_1 = arith.constant 0 : i32
    return %c0_i32, %c0_i32_0 : i32, i32
  }
  func.func @transform_8(%arg0: i32) -> (i32, i32) {
    %c0_i32 = arith.constant 0 : i32
    %c0_i32_0 = arith.constant 0 : i32
    %c0_i32_1 = arith.constant 0 : i32
    return %c0_i32, %c0_i32_0 : i32, i32
  }
  func.func @transform_9(%arg0: i32) -> (i32, i32) {
    %c0_i32 = arith.constant 0 : i32
    %c0_i32_0 = arith.constant 0 : i32
    %c0_i32_1 = arith.constant 0 : i32
    return %c0_i32, %c0_i32_0 : i32, i32
  }
  func.func @transform_10(%arg0: i32) -> (i32, i32) {
    %c0_i32 = arith.constant 0 : i32
    %c0_i32_0 = arith.constant 0 : i32
    %c0_i32_1 = arith.constant 0 : i32
    return %c0_i32, %c0_i32_0 : i32, i32
  }
  func.func @transform_11(%arg0: i32) -> (i32, i32) {
    %c0_i32 = arith.constant 0 : i32
    %c0_i32_0 = arith.constant 0 : i32
    %c0_i32_1 = arith.constant 0 : i32
    return %c0_i32, %c0_i32_0 : i32, i32
  }
  func.func @transform_12(%arg0: i32) -> (i32, i32) {
    %c0_i32 = arith.constant 0 : i32
    %c0_i32_0 = arith.constant 0 : i32
    %c0_i32_1 = arith.constant 0 : i32
    return %c0_i32, %c0_i32_0 : i32, i32
  }
  func.func @transform_13(%arg0: i32) -> (i32, i32) {
    %c0_i32 = arith.constant 0 : i32
    %c0_i32_0 = arith.constant 0 : i32
    %c0_i32_1 = arith.constant 0 : i32
    return %c0_i32, %c0_i32_0 : i32, i32
  }
  func.func @transform_14(%arg0: i32) -> (i32, i32) {
    %c0_i32 = arith.constant 0 : i32
    %c0_i32_0 = arith.constant 0 : i32
    %c0_i32_1 = arith.constant 0 : i32
    return %c0_i32, %c0_i32_0 : i32, i32
  }
  func.func @transform_15(%arg0: i32) -> (i32, i32) {
    %c0_i32 = arith.constant 0 : i32
    %c0_i32_0 = arith.constant 0 : i32
    %c0_i32_1 = arith.constant 0 : i32
    return %c0_i32, %c0_i32_0 : i32, i32
  }
  func.func @transform_16(%arg0: i32) -> (i32, i32) {
    %c0_i32 = arith.constant 0 : i32
    %c0_i32_0 = arith.constant 0 : i32
    return %arg0, %c0_i32 : i32, i32
  }
}

</mosaic_0001>

<llo_original>
// kernel: transformer_layer.1
$region0: #{transformer_layer.1}
  #allocation0 [shape = 'u32[]', space=smem, size = 0x4, offset = 0x4, fixed_abs, tag = 'smem constant byte address 0x4 - core index']
  #allocation1 [shape = 'u32[144,128]{1,0:T(1,128)}', space=vmem, size = 0x12000, scoped, tag = 'internal scratch']
  %s0 = inlined_call_operand.vmem [shape: bf16[32,128], index: 0, kind: input, shape index: {}]
  %s1 = inlined_call_operand.vmem [shape: bf16[8,128,64], index: 1, kind: input, shape index: {}]
  %s2 = inlined_call_operand.vmem [shape: bf16[8,128,64], index: 2, kind: input, shape index: {}]
  %s3 = inlined_call_operand.vmem [shape: bf16[8,128,64], index: 3, kind: input, shape index: {}]
  %s4 = inlined_call_operand.vmem [shape: bf16[8,64,128], index: 4, kind: input, shape index: {}]
  %s5 = inlined_call_operand.vmem [shape: f32[1,128], index: 5, kind: input, shape index: {}]
  %s6 = inlined_call_operand.vmem [shape: f32[1,128], index: 6, kind: input, shape index: {}]
  %s7 = inlined_call_operand.vmem [shape: f32[1,128], index: 7, kind: input, shape index: {}]
  %s8 = inlined_call_operand.vmem [shape: bf16[128,512], index: 8, kind: input, shape index: {}]
  %s9 = inlined_call_operand.vmem [shape: bf16[128,512], index: 9, kind: input, shape index: {}]
  %s10 = inlined_call_operand.vmem [shape: f32[1,512], index: 10, kind: input, shape index: {}]
  %s11 = inlined_call_operand.vmem [shape: f32[1,512], index: 11, kind: input, shape index: {}]
  %s12 = inlined_call_operand.vmem [shape: bf16[512,128], index: 12, kind: input, shape index: {}]
  %s13 = inlined_call_operand.vmem [shape: f32[1,128], index: 13, kind: input, shape index: {}]
  %s14 = inlined_call_operand.vmem [shape: f32[1,128], index: 14, kind: input, shape index: {}]
  %s15 = inlined_call_operand.vmem [shape: f32[1,128], index: 15, kind: input, shape index: {}]
  %s16 = inlined_call_operand.vmem [shape: f32[32,128], index: 16, kind: output, shape index: {}]
  %s17 = sld [smem:[#allocation0]]
  $region104: #{transformer_layer.1} parent=0
    _
  %s19 = ssub.s32 1, %s17
  %s20 = scalar_select 0, %s19, %s17
  loop: start=0, step=1, limit=4
  $region2: #{transformer_layer.1} parent=0 // loop_pre_header
    _
  $region3: #{transformer_layer.1} parent=0 // loop_header
    %s22 = sphi 0, %s26
    %p23 = scmp.ge.s32.totalorder %s22, 4
    %s32 = sphi 0, %s34
    %s35 = sphi 0, %s32
    %s36 = sphi 0, %s35
    %s52 = sphi 0, %s36
    %s56 = sphi 0, %s56
    %s58 = sphi 0, %s56
    %s59 = sphi 0, %s58
    %s73 = sphi 0, %s59
    %s77 = sphi 0, %s77
    %s79 = sphi 0, %s77
    %s80 = sphi 0, %s79
    %s94 = sphi 0, %s80
    %s98 = sphi 0, %s98
    %s100 = sphi 0, %s98
    %s101 = sphi 0, %s100
    %s115 = sphi 0, %s101
    %s119 = sphi 0, %s119
    %s121 = sphi 0, %s119
    %s122 = sphi 0, %s121
    %s136 = sphi 0, %s122
    %s140 = sphi 0, %s140
    %s142 = sphi 0, %s140
    %s143 = sphi 0, %s142
    %s157 = sphi 0, %s143
    %s161 = sphi 0, %s161
    %s163 = sphi 0, %s161
    %s164 = sphi 0, %s163
    %s178 = sphi 0, %s164
    %s182 = sphi 0, %s182
    %s184 = sphi 0, %s182
    %s185 = sphi 0, %s184
    %s199 = sphi 0, %s185
    %s203 = sphi 0, %s203
    %s205 = sphi 0, %s203
    %s206 = sphi 0, %s205
    %s220 = sphi 0, %s206
    %s224 = sphi 0, %s224
    %s226 = sphi 0, %s224
    %s227 = sphi 0, %s226
    %s241 = sphi 0, %s227
    %s245 = sphi 0, %s245
    %s247 = sphi 0, %s245
    %s248 = sphi 0, %s247
    %s262 = sphi 0, %s248
    %s266 = sphi 0, %s266
    %s268 = sphi 0, %s266
    %s269 = sphi 0, %s268
    %s283 = sphi 0, %s269
    %s287 = sphi 0, %s287
    %s289 = sphi 0, %s287
    %s290 = sphi 0, %s289
    %s304 = sphi 0, %s290
    %s308 = sphi 0, %s308
    %s310 = sphi 0, %s308
    %s311 = sphi 0, %s310
    %s325 = sphi 0, %s311
    %s329 = sphi 0, %s329
    %s331 = sphi 0, %s329
    %s332 = sphi 0, %s331
    %s346 = sphi 0, %s332
    %s350 = sphi 0, %s350
    %s352 = sphi 0, %s350
    %s353 = sphi 0, %s352
    %s367 = sphi 0, %s353
    %s373 = sphi 0, %s375
    %s376 = sphi 0, %s373
    %s377 = sphi 0, %s376
    %s393 = sphi 0, %s377
  $region4: #{transformer_layer.1} parent=0 // loop_header_branch
    %25 = sbr.rel (%p23) target = $region8
  $region5: #{transformer_layer.1} parent=0 // loop_body
    %s27 = ssub.s32 %s22, 1
    %s28 = ssub.s32 %s22, 2
    %s29 = sadd.s32 %s22, 1
    %s30 = ssub.s32 %s22, %s29
    %p31 = scmp.eq.s32.totalorder %s30, 0
    %s33 = sadd.s32 %s32, 1
    %s34 = scalar_select %p31, %s32, %s33
    %p37 = pneg %p31
    %p38 = scmp.eq.s32.totalorder %s22, 1
    %p39 = por %p37, %p38
    %p40 = scmp.ne.s32.totalorder %s32, %s35
    %p41 = scmp.eq.s32.totalorder %s22, 0
    %p42 = por %p40, %p41
    %p43 = scmp.ne.s32.totalorder %s32, %s35
    %p44 = scmp.eq.s32.totalorder %s27, 1
    %p45 = por %p43, %p44
    %p46 = scmp.ne.s32.totalorder %s35, %s36
    %p47 = scmp.eq.s32.totalorder %s27, 0
    %p48 = por %p46, %p47
    %p49 = scmp.ne.s32.totalorder %s35, %s36
    %p50 = scmp.eq.s32.totalorder %s28, 1
    %p51 = por %p49, %p50
    %p53 = scmp.ne.s32.totalorder %s36, %s52
    %p54 = scmp.eq.s32.totalorder %s28, 0
    %p55 = por %p53, %p54
    %s57 = sadd.s32 %s56, 1
    %p60 = scmp.eq.s32.totalorder %s22, 1
    %p61 = scmp.ne.s32.totalorder %s56, %s58
    %p62 = scmp.eq.s32.totalorder %s22, 0
    %p63 = por %p61, %p62
    %p64 = scmp.ne.s32.totalorder %s56, %s58
    %p65 = scmp.eq.s32.totalorder %s27, 1
    %p66 = por %p64, %p65
    %p67 = scmp.ne.s32.totalorder %s58, %s59
    %p68 = scmp.eq.s32.totalorder %s27, 0
    %p69 = por %p67, %p68
    %p70 = scmp.ne.s32.totalorder %s58, %s59
    %p71 = scmp.eq.s32.totalorder %s28, 1
    %p72 = por %p70, %p71
    %p74 = scmp.ne.s32.totalorder %s59, %s73
    %p75 = scmp.eq.s32.totalorder %s28, 0
    %p76 = por %p74, %p75
    %s78 = sadd.s32 %s77, 1
    %p81 = scmp.eq.s32.totalorder %s22, 1
    %p82 = scmp.ne.s32.totalorder %s77, %s79
    %p83 = scmp.eq.s32.totalorder %s22, 0
    %p84 = por %p82, %p83
    %p85 = scmp.ne.s32.totalorder %s77, %s79
    %p86 = scmp.eq.s32.totalorder %s27, 1
    %p87 = por %p85, %p86
    %p88 = scmp.ne.s32.totalorder %s79, %s80
    %p89 = scmp.eq.s32.totalorder %s27, 0
    %p90 = por %p88, %p89
    %p91 = scmp.ne.s32.totalorder %s79, %s80
    %p92 = scmp.eq.s32.totalorder %s28, 1
    %p93 = por %p91, %p92
    %p95 = scmp.ne.s32.totalorder %s80, %s94
    %p96 = scmp.eq.s32.totalorder %s28, 0
    %p97 = por %p95, %p96
    %s99 = sadd.s32 %s98, 1
    %p102 = scmp.eq.s32.totalorder %s22, 1
    %p103 = scmp.ne.s32.totalorder %s98, %s100
    %p104 = scmp.eq.s32.totalorder %s22, 0
    %p105 = por %p103, %p104
    %p106 = scmp.ne.s32.totalorder %s98, %s100
    %p107 = scmp.eq.s32.totalorder %s27, 1
    %p108 = por %p106, %p107
    %p109 = scmp.ne.s32.totalorder %s100, %s101
    %p110 = scmp.eq.s32.totalorder %s27, 0
    %p111 = por %p109, %p110
    %p112 = scmp.ne.s32.totalorder %s100, %s101
    %p113 = scmp.eq.s32.totalorder %s28, 1
    %p114 = por %p112, %p113
    %p116 = scmp.ne.s32.totalorder %s101, %s115
    %p117 = scmp.eq.s32.totalorder %s28, 0
    %p118 = por %p116, %p117
    %s120 = sadd.s32 %s119, 1
    %p123 = scmp.eq.s32.totalorder %s22, 1
    %p124 = scmp.ne.s32.totalorder %s119, %s121
    %p125 = scmp.eq.s32.totalorder %s22, 0
    %p126 = por %p124, %p125
    %p127 = scmp.ne.s32.totalorder %s119, %s121
    %p128 = scmp.eq.s32.totalorder %s27, 1
    %p129 = por %p127, %p128
    %p130 = scmp.ne.s32.totalorder %s121, %s122
    %p131 = scmp.eq.s32.totalorder %s27, 0
    %p132 = por %p130, %p131
    %p133 = scmp.ne.s32.totalorder %s121, %s122
    %p134 = scmp.eq.s32.totalorder %s28, 1
    %p135 = por %p133, %p134
    %p137 = scmp.ne.s32.totalorder %s122, %s136
    %p138 = scmp.eq.s32.totalorder %s28, 0
    %p139 = por %p137, %p138
    %s141 = sadd.s32 %s140, 1
    %p144 = scmp.eq.s32.totalorder %s22, 1
    %p145 = scmp.ne.s32.totalorder %s140, %s142
    %p146 = scmp.eq.s32.totalorder %s22, 0
    %p147 = por %p145, %p146
    %p148 = scmp.ne.s32.totalorder %s140, %s142
    %p149 = scmp.eq.s32.totalorder %s27, 1
    %p150 = por %p148, %p149
    %p151 = scmp.ne.s32.totalorder %s142, %s143
    %p152 = scmp.eq.s32.totalorder %s27, 0
    %p153 = por %p151, %p152
    %p154 = scmp.ne.s32.totalorder %s142, %s143
    %p155 = scmp.eq.s32.totalorder %s28, 1
    %p156 = por %p154, %p155
    %p158 = scmp.ne.s32.totalorder %s143, %s157
    %p159 = scmp.eq.s32.totalorder %s28, 0
    %p160 = por %p158, %p159
    %s162 = sadd.s32 %s161, 1
    %p165 = scmp.eq.s32.totalorder %s22, 1
    %p166 = scmp.ne.s32.totalorder %s161, %s163
    %p167 = scmp.eq.s32.totalorder %s22, 0
    %p168 = por %p166, %p167
    %p169 = scmp.ne.s32.totalorder %s161, %s163
    %p170 = scmp.eq.s32.totalorder %s27, 1
    %p171 = por %p169, %p170
    %p172 = scmp.ne.s32.totalorder %s163, %s164
    %p173 = scmp.eq.s32.totalorder %s27, 0
    %p174 = por %p172, %p173
    %p175 = scmp.ne.s32.totalorder %s163, %s164
    %p176 = scmp.eq.s32.totalorder %s28, 1
    %p177 = por %p175, %p176
    %p179 = scmp.ne.s32.totalorder %s164, %s178
    %p180 = scmp.eq.s32.totalorder %s28, 0
    %p181 = por %p179, %p180
    %s183 = sadd.s32 %s182, 1
    %p186 = scmp.eq.s32.totalorder %s22, 1
    %p187 = scmp.ne.s32.totalorder %s182, %s184
    %p188 = scmp.eq.s32.totalorder %s22, 0
    %p189 = por %p187, %p188
    %p190 = scmp.ne.s32.totalorder %s182, %s184
    %p191 = scmp.eq.s32.totalorder %s27, 1
    %p192 = por %p190, %p191
    %p193 = scmp.ne.s32.totalorder %s184, %s185
    %p194 = scmp.eq.s32.totalorder %s27, 0
    %p195 = por %p193, %p194
    %p196 = scmp.ne.s32.totalorder %s184, %s185
    %p197 = scmp.eq.s32.totalorder %s28, 1
    %p198 = por %p196, %p197
    %p200 = scmp.ne.s32.totalorder %s185, %s199
    %p201 = scmp.eq.s32.totalorder %s28, 0
    %p202 = por %p200, %p201
    %s204 = sadd.s32 %s203, 1
    %p207 = scmp.eq.s32.totalorder %s22, 1
    %p208 = scmp.ne.s32.totalorder %s203, %s205
    %p209 = scmp.eq.s32.totalorder %s22, 0
    %p210 = por %p208, %p209
    %p211 = scmp.ne.s32.totalorder %s203, %s205
    %p212 = scmp.eq.s32.totalorder %s27, 1
    %p213 = por %p211, %p212
    %p214 = scmp.ne.s32.totalorder %s205, %s206
    %p215 = scmp.eq.s32.totalorder %s27, 0
    %p216 = por %p214, %p215
    %p217 = scmp.ne.s32.totalorder %s205, %s206
    %p218 = scmp.eq.s32.totalorder %s28, 1
    %p219 = por %p217, %p218
    %p221 = scmp.ne.s32.totalorder %s206, %s220
    %p222 = scmp.eq.s32.totalorder %s28, 0
    %p223 = por %p221, %p222
    %s225 = sadd.s32 %s224, 1
    %p228 = scmp.eq.s32.totalorder %s22, 1
    %p229 = scmp.ne.s32.totalorder %s224, %s226
    %p230 = scmp.eq.s32.totalorder %s22, 0
    %p231 = por %p229, %p230
    %p232 = scmp.ne.s32.totalorder %s224, %s226
    %p233 = scmp.eq.s32.totalorder %s27, 1
    %p234 = por %p232, %p233
    %p235 = scmp.ne.s32.totalorder %s226, %s227
    %p236 = scmp.eq.s32.totalorder %s27, 0
    %p237 = por %p235, %p236
    %p238 = scmp.ne.s32.totalorder %s226, %s227
    %p239 = scmp.eq.s32.totalorder %s28, 1
    %p240 = por %p238, %p239
    %p242 = scmp.ne.s32.totalorder %s227, %s241
    %p243 = scmp.eq.s32.totalorder %s28, 0
    %p244 = por %p242, %p243
    %s246 = sadd.s32 %s245, 1
    %p249 = scmp.eq.s32.totalorder %s22, 1
    %p250 = scmp.ne.s32.totalorder %s245, %s247
    %p251 = scmp.eq.s32.totalorder %s22, 0
    %p252 = por %p250, %p251
    %p253 = scmp.ne.s32.totalorder %s245, %s247
    %p254 = scmp.eq.s32.totalorder %s27, 1
    %p255 = por %p253, %p254
    %p256 = scmp.ne.s32.totalorder %s247, %s248
    %p257 = scmp.eq.s32.totalorder %s27, 0
    %p258 = por %p256, %p257
    %p259 = scmp.ne.s32.totalorder %s247, %s248
    %p260 = scmp.eq.s32.totalorder %s28, 1
    %p261 = por %p259, %p260
    %p263 = scmp.ne.s32.totalorder %s248, %s262
    %p264 = scmp.eq.s32.totalorder %s28, 0
    %p265 = por %p263, %p264
    %s267 = sadd.s32 %s266, 1
    %p270 = scmp.eq.s32.totalorder %s22, 1
    %p271 = scmp.ne.s32.totalorder %s266, %s268
    %p272 = scmp.eq.s32.totalorder %s22, 0
    %p273 = por %p271, %p272
    %p274 = scmp.ne.s32.totalorder %s266, %s268
    %p275 = scmp.eq.s32.totalorder %s27, 1
    %p276 = por %p274, %p275
    %p277 = scmp.ne.s32.totalorder %s268, %s269
    %p278 = scmp.eq.s32.totalorder %s27, 0
    %p279 = por %p277, %p278
    %p280 = scmp.ne.s32.totalorder %s268, %s269
    %p281 = scmp.eq.s32.totalorder %s28, 1
    %p282 = por %p280, %p281
    %p284 = scmp.ne.s32.totalorder %s269, %s283
    %p285 = scmp.eq.s32.totalorder %s28, 0
    %p286 = por %p284, %p285
    %s288 = sadd.s32 %s287, 1
    %p291 = scmp.eq.s32.totalorder %s22, 1
    %p292 = scmp.ne.s32.totalorder %s287, %s289
    %p293 = scmp.eq.s32.totalorder %s22, 0
    %p294 = por %p292, %p293
    %p295 = scmp.ne.s32.totalorder %s287, %s289
    %p296 = scmp.eq.s32.totalorder %s27, 1
    %p297 = por %p295, %p296
    %p298 = scmp.ne.s32.totalorder %s289, %s290
    %p299 = scmp.eq.s32.totalorder %s27, 0
    %p300 = por %p298, %p299
    %p301 = scmp.ne.s32.totalorder %s289, %s290
    %p302 = scmp.eq.s32.totalorder %s28, 1
    %p303 = por %p301, %p302
    %p305 = scmp.ne.s32.totalorder %s290, %s304
    %p306 = scmp.eq.s32.totalorder %s28, 0
    %p307 = por %p305, %p306
    %s309 = sadd.s32 %s308, 1
    %p312 = scmp.eq.s32.totalorder %s22, 1
    %p313 = scmp.ne.s32.totalorder %s308, %s310
    %p314 = scmp.eq.s32.totalorder %s22, 0
    %p315 = por %p313, %p314
    %p316 = scmp.ne.s32.totalorder %s308, %s310
    %p317 = scmp.eq.s32.totalorder %s27, 1
    %p318 = por %p316, %p317
    %p319 = scmp.ne.s32.totalorder %s310, %s311
    %p320 = scmp.eq.s32.totalorder %s27, 0
    %p321 = por %p319, %p320
    %p322 = scmp.ne.s32.totalorder %s310, %s311
    %p323 = scmp.eq.s32.totalorder %s28, 1
    %p324 = por %p322, %p323
    %p326 = scmp.ne.s32.totalorder %s311, %s325
    %p327 = scmp.eq.s32.totalorder %s28, 0
    %p328 = por %p326, %p327
    %s330 = sadd.s32 %s329, 1
    %p333 = scmp.eq.s32.totalorder %s22, 1
    %p334 = scmp.ne.s32.totalorder %s329, %s331
    %p335 = scmp.eq.s32.totalorder %s22, 0
    %p336 = por %p334, %p335
    %p337 = scmp.ne.s32.totalorder %s329, %s331
    %p338 = scmp.eq.s32.totalorder %s27, 1
    %p339 = por %p337, %p338
    %p340 = scmp.ne.s32.totalorder %s331, %s332
    %p341 = scmp.eq.s32.totalorder %s27, 0
    %p342 = por %p340, %p341
    %p343 = scmp.ne.s32.totalorder %s331, %s332
    %p344 = scmp.eq.s32.totalorder %s28, 1
    %p345 = por %p343, %p344
    %p347 = scmp.ne.s32.totalorder %s332, %s346
    %p348 = scmp.eq.s32.totalorder %s28, 0
    %p349 = por %p347, %p348
    %s351 = sadd.s32 %s350, 1
    %p354 = scmp.eq.s32.totalorder %s22, 1
    %p355 = scmp.ne.s32.totalorder %s350, %s352
    %p356 = scmp.eq.s32.totalorder %s22, 0
    %p357 = por %p355, %p356
    %p358 = scmp.ne.s32.totalorder %s350, %s352
    %p359 = scmp.eq.s32.totalorder %s27, 1
    %p360 = por %p358, %p359
    %p361 = scmp.ne.s32.totalorder %s352, %s353
    %p362 = scmp.eq.s32.totalorder %s27, 0
    %p363 = por %p361, %p362
    %p364 = scmp.ne.s32.totalorder %s352, %s353
    %p365 = scmp.eq.s32.totalorder %s28, 1
    %p366 = por %p364, %p365
    %p368 = scmp.ne.s32.totalorder %s353, %s367
    %p369 = scmp.eq.s32.totalorder %s28, 0
    %p370 = por %p368, %p369
    %s371 = ssub.s32 %s22, %s29
    %p372 = scmp.eq.s32.totalorder %s371, 0
    %s374 = sadd.s32 %s373, 1
    %s375 = scalar_select %p372, %s373, %s374
    %p378 = pneg %p372
    %p379 = scmp.eq.s32.totalorder %s22, 1
    %p380 = por %p378, %p379
    %p381 = scmp.ne.s32.totalorder %s373, %s376
    %p382 = scmp.eq.s32.totalorder %s22, 0
    %p383 = por %p381, %p382
    %p384 = scmp.ne.s32.totalorder %s373, %s376
    %p385 = scmp.eq.s32.totalorder %s27, 1
    %p386 = por %p384, %p385
    %p387 = scmp.ne.s32.totalorder %s376, %s377
    %p388 = scmp.eq.s32.totalorder %s27, 0
    %p389 = por %p387, %p388
    %p390 = scmp.ne.s32.totalorder %s376, %s377
    %p391 = scmp.eq.s32.totalorder %s28, 1
    %p392 = por %p390, %p391
    %p394 = scmp.ne.s32.totalorder %s377, %s393
    %p395 = scmp.eq.s32.totalorder %s28, 0
    %p396 = por %p394, %p395
    %p397 = scmp.le.s32.totalorder 1, %s22
    %p398 = scmp.lt.s32.totalorder %s22, 3
    %p399 = pnand %p397, %p398
    %p400 = pneg %p399
    // Predicated region
    $region9: #{transformer_layer.1} parent=5 // pred_check
      _
    $region10: #{transformer_layer.1} parent=5 // pred_check_branch
      %402 = sbr.rel (%p399) target = $region12
    $region11: #{transformer_layer.1} parent=5 // pred_region
      %s403 = ssub.s32 %s22, 1
      // Predicated region
      $region13: #{transformer_layer.1} parent=11 // pred_check
        %p404 = pneg %p69
      $region14: #{transformer_layer.1} parent=11 // pred_check_branch
        %406 = sbr.rel (%p404) target = $region16
      $region15: #{transformer_layer.1} parent=11 // pred_region
        _
      $region16: #{transformer_layer.1} parent=11 // pred_fallthru
        _
      // Predicated region
      $region17: #{transformer_layer.1} parent=11 // pred_check
        %p407 = pneg %p90
      $region18: #{transformer_layer.1} parent=11 // pred_check_branch
        %409 = sbr.rel (%p407) target = $region20
      $region19: #{transformer_layer.1} parent=11 // pred_region
        _
      $region20: #{transformer_layer.1} parent=11 // pred_fallthru
        _
      // Predicated region
      $region21: #{transformer_layer.1} parent=11 // pred_check
        %p410 = pneg %p111
      $region22: #{transformer_layer.1} parent=11 // pred_check_branch
        %412 = sbr.rel (%p410) target = $region24
      $region23: #{transformer_layer.1} parent=11 // pred_region
        _
      $region24: #{transformer_layer.1} parent=11 // pred_fallthru
        _
      // Predicated region
      $region25: #{transformer_layer.1} parent=11 // pred_check
        %p413 = pneg %p132
      $region26: #{transformer_layer.1} parent=11 // pred_check_branch
        %415 = sbr.rel (%p413) target = $region28
      $region27: #{transformer_layer.1} parent=11 // pred_region
        _
      $region28: #{transformer_layer.1} parent=11 // pred_fallthru
        _
      // Predicated region
      $region29: #{transformer_layer.1} parent=11 // pred_check
        %p416 = pneg %p153
      $region30: #{transformer_layer.1} parent=11 // pred_check_branch
        %418 = sbr.rel (%p416) target = $region32
      $region31: #{transformer_layer.1} parent=11 // pred_region
        _
      $region32: #{transformer_layer.1} parent=11 // pred_fallthru
        _
      // Predicated region
      $region33: #{transformer_layer.1} parent=11 // pred_check
        %p419 = pneg %p174
      $region34: #{transformer_layer.1} parent=11 // pred_check_branch
        %421 = sbr.rel (%p419) target = $region36
      $region35: #{transformer_layer.1} parent=11 // pred_region
        _
      $region36: #{transformer_layer.1} parent=11 // pred_fallthru
        _
      // Predicated region
      $region37: #{transformer_layer.1} parent=11 // pred_check
        %p422 = pneg %p195
      $region38: #{transformer_layer.1} parent=11 // pred_check_branch
        %424 = sbr.rel (%p422) target = $region40
      $region39: #{transformer_layer.1} parent=11 // pred_region
        _
      $region40: #{transformer_layer.1} parent=11 // pred_fallthru
        _
      // Predicated region
      $region41: #{transformer_layer.1} parent=11 // pred_check
        %p425 = pneg %p216
      $region42: #{transformer_layer.1} parent=11 // pred_check_branch
        %427 = sbr.rel (%p425) target = $region44
      $region43: #{transformer_layer.1} parent=11 // pred_region
        _
      $region44: #{transformer_layer.1} parent=11 // pred_fallthru
        _
      // Predicated region
      $region45: #{transformer_layer.1} parent=11 // pred_check
        %p428 = pneg %p237
      $region46: #{transformer_layer.1} parent=11 // pred_check_branch
        %430 = sbr.rel (%p428) target = $region48
      $region47: #{transformer_layer.1} parent=11 // pred_region
        _
      $region48: #{transformer_layer.1} parent=11 // pred_fallthru
        _
      // Predicated region
      $region49: #{transformer_layer.1} parent=11 // pred_check
        %p431 = pneg %p258
      $region50: #{transformer_layer.1} parent=11 // pred_check_branch
        %433 = sbr.rel (%p431) target = $region52
      $region51: #{transformer_layer.1} parent=11 // pred_region
        _
      $region52: #{transformer_layer.1} parent=11 // pred_fallthru
        _
      // Predicated region
      $region53: #{transformer_layer.1} parent=11 // pred_check
        %p434 = pneg %p279
      $region54: #{transformer_layer.1} parent=11 // pred_check_branch
        %436 = sbr.rel (%p434) target = $region56
      $region55: #{transformer_layer.1} parent=11 // pred_region
        _
      $region56: #{transformer_layer.1} parent=11 // pred_fallthru
        _
      // Predicated region
      $region57: #{transformer_layer.1} parent=11 // pred_check
        %p437 = pneg %p300
      $region58: #{transformer_layer.1} parent=11 // pred_check_branch
        %439 = sbr.rel (%p437) target = $region60
      $region59: #{transformer_layer.1} parent=11 // pred_region
        _
      $region60: #{transformer_layer.1} parent=11 // pred_fallthru
        _
      // Predicated region
      $region61: #{transformer_layer.1} parent=11 // pred_check
        %p440 = pneg %p321
      $region62: #{transformer_layer.1} parent=11 // pred_check_branch
        %442 = sbr.rel (%p440) target = $region64
      $region63: #{transformer_layer.1} parent=11 // pred_region
        _
      $region64: #{transformer_layer.1} parent=11 // pred_fallthru
        _
      // Predicated region
      $region65: #{transformer_layer.1} parent=11 // pred_check
        %p443 = pneg %p342
      $region66: #{transformer_layer.1} parent=11 // pred_check_branch
        %445 = sbr.rel (%p443) target = $region68
      $region67: #{transformer_layer.1} parent=11 // pred_region
        _
      $region68: #{transformer_layer.1} parent=11 // pred_fallthru
        _
      // Predicated region
      $region69: #{transformer_layer.1} parent=11 // pred_check
        %p446 = pneg %p363
      $region70: #{transformer_layer.1} parent=11 // pred_check_branch
        %448 = sbr.rel (%p446) target = $region72
      $region71: #{transformer_layer.1} parent=11 // pred_region
        _
      $region72: #{transformer_layer.1} parent=11 // pred_fallthru
        _
    $region12: #{transformer_layer.1} parent=5 // pred_fallthru
      _
    %p449 = scmp.lt.s32.totalorder %s22, 2
    // Predicated region
    $region73: #{transformer_layer.1} parent=5 // pred_check
      %p450 = pneg %p449
    $region74: #{transformer_layer.1} parent=5 // pred_check_branch
      %452 = sbr.rel (%p450) target = $region76
    $region75: #{transformer_layer.1} parent=5 // pred_region
      // Predicated region
      $region77: #{transformer_layer.1} parent=75 // pred_check
        %p453 = pneg %p42
      $region78: #{transformer_layer.1} parent=75 // pred_check_branch
        %455 = sbr.rel (%p453) target = $region80
      $region79: #{transformer_layer.1} parent=75 // pred_region
        %s456 = smul.u32 2, %s22
        %p457 = scmp.lt.s32.totalorder %s456, 3
        %s458 = scalar_select %p457, %s456, 3
        %s459 = smul.addr %s458, 4
        %s460 = scalar_lea.vmem %s0, %s459
        %s461 = smul.u32 2, %s22
      $region80: #{transformer_layer.1} parent=75 // pred_fallthru
        _
    $region76: #{transformer_layer.1} parent=5 // pred_fallthru
      _
    %p462 = scmp.le.s32.totalorder 1, %s22
    %p463 = scmp.lt.s32.totalorder %s22, 3
    %p464 = pnand %p462, %p463
    %p465 = pneg %p464
    // Predicated region
    $region81: #{transformer_layer.1} parent=5 // pred_check
      _
    $region82: #{transformer_layer.1} parent=5 // pred_check_branch
      %467 = sbr.rel (%p464) target = $region84
    $region83: #{transformer_layer.1} parent=5 // pred_region
      %s468 = ssub.s32 %s22, 1
      %s469 = smul.u32 2, %s27
      %p470 = scmp.lt.s32.totalorder %s469, 3
      %s471 = scalar_select %p470, %s469, 3
      %s472 = smul.addr %s471, 4
      %s473 = scalar_lea.vmem %s0, %s472
      %p474 = pneg %p48
      %p475 = pneg %p45
      %p476 = pneg %p69
      %p477 = pneg %p66
      %p478 = pneg %p90
      %p479 = pneg %p87
      %p480 = pneg %p111
      %p481 = pneg %p108
      %p482 = pneg %p132
      %p483 = pneg %p129
      %p484 = pneg %p153
      %p485 = pneg %p150
      %p486 = pneg %p174
      %p487 = pneg %p171
      %p488 = pneg %p195
      %p489 = pneg %p192
      %p490 = pneg %p216
      %p491 = pneg %p213
      %p492 = pneg %p237
      %p493 = pneg %p234
      %p494 = pneg %p258
      %p495 = pneg %p255
      %p496 = pneg %p279
      %p497 = pneg %p276
      %p498 = pneg %p300
      %p499 = pneg %p297
      %p500 = pneg %p321
      %p501 = pneg %p318
      %p502 = pneg %p342
      %p503 = pneg %p339
      %p504 = pneg %p363
      %p505 = pneg %p360
      %p506 = pneg %p389
      %p507 = pneg %p386
      %s508 = smul.u32 2, %s27
      %p509 = scmp.lt.s32.totalorder %s508, 3
      %s510 = scalar_select %p509, %s508, 3
      %s511 = smul.addr %s510, 8
      %s512 = scalar_lea.vmem %s16, %s511
      %s513 = smul.u32 2, %s27
      %p514 = scmp.lt.s32.totalorder %s513, 3
      %s515 = scalar_select %p514, %s513, 3
      %s516 = smul.addr %s515, 4
      %s517 = scalar_lea.vmem %s0, %s516
      %s518 = smul.u32 2, %s27
      %s519 = smul.u32 2, %s27
      %p520 = scmp.lt.s32.totalorder %s519, 3
      %s521 = scalar_select %p520, %s519, 3
      %s522 = smul.addr %s521, 8
      %s523 = scalar_lea.vmem %s16, %s522
      %s524 = smul.u32 2, %s27
      %v526 = vld [vmem:[%s517] sm:$0xf]
      %v527 = vld [vmem:[%s517 + $0x4] sm:$0xf]
      loop: start=0, step=1, limit=8
      $region85: #{transformer_layer.1} parent=83 // loop_pre_header
        _
      $region86: #{transformer_layer.1} parent=83 // loop_header
        %s529 = sphi 0, %s533
        %p530 = scmp.ge.s32.totalorder %s529, 8
        %v534 = vphi 0.0, %v1063
        %v535 = vphi 0.0, %v1064
      $region87: #{transformer_layer.1} parent=83 // loop_header_branch
        %532 = sbr.rel (%p530) target = $region91
      $region88: #{transformer_layer.1} parent=83 // loop_body
        %s536 = smul.u32 %s529, 16
        %s537 = smul.addr %s536, 4
        %s538 = scalar_lea.vmem %s1, %s537
        %v539 = vld [vmem:[%s538] sm:$0xf]
        %v540 = vld [vmem:[%s538 + $0x4] sm:$0xf]
        %v541 = vld [vmem:[%s538 + $0x8] sm:$0xf]
        %v542 = vld [vmem:[%s538 + $0xc] sm:$0xf]
        %v543 = vld [vmem:[%s538 + $0x10] sm:$0xf]
        %v544 = vld [vmem:[%s538 + $0x14] sm:$0xf]
        %v545 = vld [vmem:[%s538 + $0x18] sm:$0xf]
        %v546 = vld [vmem:[%s538 + $0x1c] sm:$0xf]
        %v547 = vld [vmem:[%s538 + $0x20] sm:$0xf]
        %v548 = vld [vmem:[%s538 + $0x24] sm:$0xf]
        %v549 = vld [vmem:[%s538 + $0x28] sm:$0xf]
        %v550 = vld [vmem:[%s538 + $0x2c] sm:$0xf]
        %v551 = vld [vmem:[%s538 + $0x30] sm:$0xf]
        %v552 = vld [vmem:[%s538 + $0x34] sm:$0xf]
        %v553 = vld [vmem:[%s538 + $0x38] sm:$0xf]
        %v554 = vld [vmem:[%s538 + $0x3c] sm:$0xf]
        %v557 = vunpack.c.l.b16 %v526
        %v558 = vunpack.c.l.b16 %v527
        %v559 = vpack.c.b16 %v558, %v557
        %v577 = vunpack.c.l.b16 %v539
        %v578 = vunpack.c.l.b16 %v540
        %v579 = vunpack.c.l.b16 %v541
        %v580 = vunpack.c.l.b16 %v542
        %v581 = vunpack.c.l.b16 %v543
        %v582 = vunpack.c.l.b16 %v544
        %v583 = vunpack.c.l.b16 %v545
        %v584 = vunpack.c.l.b16 %v546
        %v585 = vunpack.c.l.b16 %v547
        %v586 = vunpack.c.l.b16 %v548
        %v587 = vunpack.c.l.b16 %v549
        %v588 = vunpack.c.l.b16 %v550
        %v589 = vunpack.c.l.b16 %v551
        %v590 = vunpack.c.l.b16 %v552
        %v591 = vunpack.c.l.b16 %v553
        %v592 = vunpack.c.l.b16 %v554
        %v593 = vpack.c.b16 %v578, %v577
        %v594 = vpack.c.b16 %v580, %v579
        %v595 = vpack.c.b16 %v582, %v581
        %v596 = vpack.c.b16 %v584, %v583
        %v597 = vpack.c.b16 %v586, %v585
        %v598 = vpack.c.b16 %v588, %v587
        %v599 = vpack.c.b16 %v590, %v589
        %v600 = vpack.c.b16 %v592, %v591
        %609 = vmatprep.subr.bf16.mxu0 0
        %610 = vmatpush1.bf16.msra.mxu0 %v593
        %611 = vmatprep.subr.bf16.mxu0 0
        %612 = vmatpush1.bf16.msra.mxu0 %v594
        %613 = vmatprep.subr.bf16.mxu0 0
        %614 = vmatpush1.bf16.msra.mxu0 %v595
        %615 = vmatprep.subr.bf16.mxu0 0
        %616 = vmatpush1.bf16.msra.mxu0 %v596
        %617 = vmatprep.subr.bf16.mxu0 0
        %618 = vmatpush1.bf16.msra.mxu0 %v597
        %619 = vmatprep.subr.bf16.mxu0 0
        %620 = vmatpush1.bf16.msra.mxu0 %v598
        %621 = vmatprep.subr.bf16.mxu0 0
        %622 = vmatpush1.bf16.msra.mxu0 %v599
        %623 = vmatprep.subr.bf16.mxu0 0
        %624 = vmatpush1.bf16.msra.mxu0 %v600
        %625 = vmatprep.subr.bf16.mxu0 0
        %626 = vmatpush1.bf16.msra.mxu0 0
        %627 = vmatprep.subr.bf16.mxu0 0
        %628 = vmatpush1.bf16.msra.mxu0 0
        %629 = vmatprep.subr.bf16.mxu0 0
        %630 = vmatpush1.bf16.msra.mxu0 0
        %631 = vmatprep.subr.bf16.mxu0 0
        %632 = vmatpush1.bf16.msra.mxu0 0
        %633 = vmatprep.subr.bf16.mxu0 0
        %634 = vmatpush1.bf16.msra.mxu0 0
        %635 = vmatprep.subr.bf16.mxu0 0
        %636 = vmatpush1.bf16.msra.mxu0 0
        %637 = vmatprep.subr.bf16.mxu0 0
        %638 = vmatpush1.bf16.msra.mxu0 0
        %639 = vmatprep.subr.bf16.mxu0 0
        %640 = vmatpush1.bf16.msra.mxu0 0
        %641 = vmatprep.mubr.bf16.mxu0 0
        %642 = vmatmul.mubr.bf16.gmra.mrb[0].mxu0 %v559
        %v643 = vpop.f32.mrb[0].mxu0
        %v644 = vadd.f32 0.0, %v643
        %v645 = vpop.f32.mrb[0].mxu0
        %v646 = vpop.f32.mrb[0].mxu0
        %v647 = vadd.f32 0.0, %v646
        %v648 = vpop.f32.mrb[0].mxu0
        %649 = vdwg.mxu0
        %s650 = smul.addr %s536, 4
        %s651 = scalar_lea.vmem %s2, %s650
        %v652 = vld [vmem:[%s651] sm:$0xf]
        %v653 = vld [vmem:[%s651 + $0x4] sm:$0xf]
        %v654 = vld [vmem:[%s651 + $0x8] sm:$0xf]
        %v655 = vld [vmem:[%s651 + $0xc] sm:$0xf]
        %v656 = vld [vmem:[%s651 + $0x10] sm:$0xf]
        %v657 = vld [vmem:[%s651 + $0x14] sm:$0xf]
        %v658 = vld [vmem:[%s651 + $0x18] sm:$0xf]
        %v659 = vld [vmem:[%s651 + $0x1c] sm:$0xf]
        %v660 = vld [vmem:[%s651 + $0x20] sm:$0xf]
        %v661 = vld [vmem:[%s651 + $0x24] sm:$0xf]
        %v662 = vld [vmem:[%s651 + $0x28] sm:$0xf]
        %v663 = vld [vmem:[%s651 + $0x2c] sm:$0xf]
        %v664 = vld [vmem:[%s651 + $0x30] sm:$0xf]
        %v665 = vld [vmem:[%s651 + $0x34] sm:$0xf]
        %v666 = vld [vmem:[%s651 + $0x38] sm:$0xf]
        %v667 = vld [vmem:[%s651 + $0x3c] sm:$0xf]
        %v684 = vunpack.c.l.b16 %v652
        %v685 = vunpack.c.l.b16 %v653
        %v686 = vunpack.c.l.b16 %v654
        %v687 = vunpack.c.l.b16 %v655
        %v688 = vunpack.c.l.b16 %v656
        %v689 = vunpack.c.l.b16 %v657
        %v690 = vunpack.c.l.b16 %v658
        %v691 = vunpack.c.l.b16 %v659
        %v692 = vunpack.c.l.b16 %v660
        %v693 = vunpack.c.l.b16 %v661
        %v694 = vunpack.c.l.b16 %v662
        %v695 = vunpack.c.l.b16 %v663
        %v696 = vunpack.c.l.b16 %v664
        %v697 = vunpack.c.l.b16 %v665
        %v698 = vunpack.c.l.b16 %v666
        %v699 = vunpack.c.l.b16 %v667
        %v700 = vpack.c.b16 %v685, %v684
        %v701 = vpack.c.b16 %v687, %v686
        %v702 = vpack.c.b16 %v689, %v688
        %v703 = vpack.c.b16 %v691, %v690
        %v704 = vpack.c.b16 %v693, %v692
        %v705 = vpack.c.b16 %v695, %v694
        %v706 = vpack.c.b16 %v697, %v696
        %v707 = vpack.c.b16 %v699, %v698
        %716 = vmatprep.subr.bf16.mxu0 0
        %717 = vmatpush1.bf16.msra.mxu0 %v700
        %718 = vmatprep.subr.bf16.mxu0 0
        %719 = vmatpush1.bf16.msra.mxu0 %v701
        %720 = vmatprep.subr.bf16.mxu0 0
        %721 = vmatpush1.bf16.msra.mxu0 %v702
        %722 = vmatprep.subr.bf16.mxu0 0
        %723 = vmatpush1.bf16.msra.mxu0 %v703
        %724 = vmatprep.subr.bf16.mxu0 0
        %725 = vmatpush1.bf16.msra.mxu0 %v704
        %726 = vmatprep.subr.bf16.mxu0 0
        %727 = vmatpush1.bf16.msra.mxu0 %v705
        %728 = vmatprep.subr.bf16.mxu0 0
        %729 = vmatpush1.bf16.msra.mxu0 %v706
        %730 = vmatprep.subr.bf16.mxu0 0
        %731 = vmatpush1.bf16.msra.mxu0 %v707
        %732 = vmatprep.subr.bf16.mxu0 0
        %733 = vmatpush1.bf16.msra.mxu0 0
        %734 = vmatprep.subr.bf16.mxu0 0
        %735 = vmatpush1.bf16.msra.mxu0 0
        %736 = vmatprep.subr.bf16.mxu0 0
        %737 = vmatpush1.bf16.msra.mxu0 0
        %738 = vmatprep.subr.bf16.mxu0 0
        %739 = vmatpush1.bf16.msra.mxu0 0
        %740 = vmatprep.subr.bf16.mxu0 0
        %741 = vmatpush1.bf16.msra.mxu0 0
        %742 = vmatprep.subr.bf16.mxu0 0
        %743 = vmatpush1.bf16.msra.mxu0 0
        %744 = vmatprep.subr.bf16.mxu0 0
        %745 = vmatpush1.bf16.msra.mxu0 0
        %746 = vmatprep.subr.bf16.mxu0 0
        %747 = vmatpush1.bf16.msra.mxu0 0
        %748 = vmatprep.mubr.bf16.mxu0 0
        %749 = vmatmul.mubr.bf16.gmra.mrb[0].mxu0 %v559
        %v750 = vpop.f32.mrb[0].mxu0
        %v751 = vadd.f32 0.0, %v750
        %v752 = vpop.f32.mrb[0].mxu0
        %v753 = vpop.f32.mrb[0].mxu0
        %v754 = vadd.f32 0.0, %v753
        %v755 = vpop.f32.mrb[0].mxu0
        %756 = vdwg.mxu0
        %s757 = smul.addr %s536, 4
        %s758 = scalar_lea.vmem %s3, %s757
        %v759 = vld [vmem:[%s758] sm:$0xf]
        %v760 = vld [vmem:[%s758 + $0x4] sm:$0xf]
        %v761 = vld [vmem:[%s758 + $0x8] sm:$0xf]
        %v762 = vld [vmem:[%s758 + $0xc] sm:$0xf]
        %v763 = vld [vmem:[%s758 + $0x10] sm:$0xf]
        %v764 = vld [vmem:[%s758 + $0x14] sm:$0xf]
        %v765 = vld [vmem:[%s758 + $0x18] sm:$0xf]
        %v766 = vld [vmem:[%s758 + $0x1c] sm:$0xf]
        %v767 = vld [vmem:[%s758 + $0x20] sm:$0xf]
        %v768 = vld [vmem:[%s758 + $0x24] sm:$0xf]
        %v769 = vld [vmem:[%s758 + $0x28] sm:$0xf]
        %v770 = vld [vmem:[%s758 + $0x2c] sm:$0xf]
        %v771 = vld [vmem:[%s758 + $0x30] sm:$0xf]
        %v772 = vld [vmem:[%s758 + $0x34] sm:$0xf]
        %v773 = vld [vmem:[%s758 + $0x38] sm:$0xf]
        %v774 = vld [vmem:[%s758 + $0x3c] sm:$0xf]
        %v791 = vunpack.c.l.b16 %v759
        %v792 = vunpack.c.l.b16 %v760
        %v793 = vunpack.c.l.b16 %v761
        %v794 = vunpack.c.l.b16 %v762
        %v795 = vunpack.c.l.b16 %v763
        %v796 = vunpack.c.l.b16 %v764
        %v797 = vunpack.c.l.b16 %v765
        %v798 = vunpack.c.l.b16 %v766
        %v799 = vunpack.c.l.b16 %v767
        %v800 = vunpack.c.l.b16 %v768
        %v801 = vunpack.c.l.b16 %v769
        %v802 = vunpack.c.l.b16 %v770
        %v803 = vunpack.c.l.b16 %v771
        %v804 = vunpack.c.l.b16 %v772
        %v805 = vunpack.c.l.b16 %v773
        %v806 = vunpack.c.l.b16 %v774
        %v807 = vpack.c.b16 %v792, %v791
        %v808 = vpack.c.b16 %v794, %v793
        %v809 = vpack.c.b16 %v796, %v795
        %v810 = vpack.c.b16 %v798, %v797
        %v811 = vpack.c.b16 %v800, %v799
        %v812 = vpack.c.b16 %v802, %v801
        %v813 = vpack.c.b16 %v804, %v803
        %v814 = vpack.c.b16 %v806, %v805
        %823 = vmatprep.subr.bf16.mxu0 0
        %824 = vmatpush1.bf16.msra.mxu0 %v807
        %825 = vmatprep.subr.bf16.mxu0 0
        %826 = vmatpush1.bf16.msra.mxu0 %v808
        %827 = vmatprep.subr.bf16.mxu0 0
        %828 = vmatpush1.bf16.msra.mxu0 %v809
        %829 = vmatprep.subr.bf16.mxu0 0
        %830 = vmatpush1.bf16.msra.mxu0 %v810
        %831 = vmatprep.subr.bf16.mxu0 0
        %832 = vmatpush1.bf16.msra.mxu0 %v811
        %833 = vmatprep.subr.bf16.mxu0 0
        %834 = vmatpush1.bf16.msra.mxu0 %v812
        %835 = vmatprep.subr.bf16.mxu0 0
        %836 = vmatpush1.bf16.msra.mxu0 %v813
        %837 = vmatprep.subr.bf16.mxu0 0
        %838 = vmatpush1.bf16.msra.mxu0 %v814
        %839 = vmatprep.subr.bf16.mxu0 0
        %840 = vmatpush1.bf16.msra.mxu0 0
        %841 = vmatprep.subr.bf16.mxu0 0
        %842 = vmatpush1.bf16.msra.mxu0 0
        %843 = vmatprep.subr.bf16.mxu0 0
        %844 = vmatpush1.bf16.msra.mxu0 0
        %845 = vmatprep.subr.bf16.mxu0 0
        %846 = vmatpush1.bf16.msra.mxu0 0
        %847 = vmatprep.subr.bf16.mxu0 0
        %848 = vmatpush1.bf16.msra.mxu0 0
        %849 = vmatprep.subr.bf16.mxu0 0
        %850 = vmatpush1.bf16.msra.mxu0 0
        %851 = vmatprep.subr.bf16.mxu0 0
        %852 = vmatpush1.bf16.msra.mxu0 0
        %853 = vmatprep.subr.bf16.mxu0 0
        %854 = vmatpush1.bf16.msra.mxu0 0
        %855 = vmatprep.mubr.bf16.mxu0 0
        %856 = vmatmul.mubr.bf16.gmra.mrb[0].mxu0 %v559
        %v857 = vpop.f32.mrb[0].mxu0
        %v858 = vadd.f32 0.0, %v857
        %v859 = vpop.f32.mrb[0].mxu0
        %v860 = vpop.f32.mrb[0].mxu0
        %v861 = vadd.f32 0.0, %v860
        %v862 = vpop.f32.mrb[0].mxu0
        %863 = vdwg.mxu0
        %v864 = vpack.c.bf16 %v647, %v644
        %v865 = vpack.c.bf16 %v754, %v751
        %vm866 = vcmask 523264
        %v868 = vsel %vm866, %v864, 0
        %v871 = vsel %vm866, %v865, 0
        %873 = vmatprep.subr.bf16.mxu0 0
        %874 = vmatpush1.bf16.xpose.msra.mxu0 %v871
        %875 = vmatprep.subr.bf16.mxu0 0
        %876 = vmatpush1.bf16.xpose.msra.mxu0 0
        %877 = vmatprep.subr.bf16.mxu0 0
        %878 = vmatpush1.bf16.xpose.msra.mxu0 0
        %879 = vmatprep.subr.bf16.mxu0 0
        %880 = vmatpush1.bf16.xpose.msra.mxu0 0
        %881 = vmatprep.subr.bf16.mxu0 0
        %882 = vmatpush1.bf16.xpose.msra.mxu0 0
        %883 = vmatprep.subr.bf16.mxu0 0
        %884 = vmatpush1.bf16.xpose.msra.mxu0 0
        %885 = vmatprep.subr.bf16.mxu0 0
        %886 = vmatpush1.bf16.xpose.msra.mxu0 0
        %887 = vmatprep.subr.bf16.mxu0 0
        %888 = vmatpush1.bf16.xpose.msra.mxu0 0
        %889 = vmatprep.subr.bf16.mxu0 0
        %890 = vmatpush1.bf16.xpose.msra.mxu0 0
        %891 = vmatprep.subr.bf16.mxu0 0
        %892 = vmatpush1.bf16.xpose.msra.mxu0 0
        %893 = vmatprep.subr.bf16.mxu0 0
        %894 = vmatpush1.bf16.xpose.msra.mxu0 0
        %895 = vmatprep.subr.bf16.mxu0 0
        %896 = vmatpush1.bf16.xpose.msra.mxu0 0
        %897 = vmatprep.subr.bf16.mxu0 0
        %898 = vmatpush1.bf16.xpose.msra.mxu0 0
        %899 = vmatprep.subr.bf16.mxu0 0
        %900 = vmatpush1.bf16.xpose.msra.mxu0 0
        %901 = vmatprep.subr.bf16.mxu0 0
        %902 = vmatpush1.bf16.xpose.msra.mxu0 0
        %903 = vmatprep.subr.bf16.mxu0 0
        %904 = vmatpush1.bf16.xpose.msra.mxu0 0
        %905 = vmatprep.mubr.bf16.mxu0 0
        %906 = vmatmul.mubr.bf16.gmra.mrb[0].mxu0 %v868
        %v907 = vpop.f32.mrb[0].mxu0
        %v908 = vadd.f32 0.0, %v907
        %v909 = vpop.f32.mrb[0].mxu0
        %v910 = vpop.f32.mrb[0].mxu0
        %v911 = vadd.f32 0.0, %v910
        %v912 = vpop.f32.mrb[0].mxu0
        %913 = vdwg.mxu0
        %vm914 = vcmask 130048
        %v915 = vsel %vm914, %v908, -inf
        %916 = vmax.xlane.f32.xlu0 %v915
        %v917 = vpop.xlane.xlu0 %916
        %v918 = vsel %vm914, %v911, -inf
        %919 = vmax.xlane.f32.xlu0 %v918
        %v920 = vpop.xlane.xlu0 %919
        %v921 = vsub.f32 %v908, %v917
        %v922 = vsub.f32 %v911, %v920
        %v923 = vmul.f32 %v921, 1.442695
        %v924 = vpow.pop %v923
        %v925 = vmul.f32 %v922, 1.442695
        %v926 = vpow.pop %v925
        %v927 = vsel %vm914, %v924, 0.0
        %928 = vadd.xlane.f32.xlu0 %v927
        %v929 = vpop.xlane.xlu0 %928
        %v930 = vsel %vm914, %v926, 0.0
        %931 = vadd.xlane.f32.xlu0 %v930
        %v932 = vpop.xlane.xlu0 %931
        %v933 = vrcp.pop %v929
        %v934 = vrcp.pop %v932
        %v935 = vmul.f32 %v924, %v933
        %v936 = vmul.f32 %v926, %v934
        %v937 = vpack.c.bf16 %v936, %v935
        %v938 = vpack.c.bf16 %v861, %v858
        %v940 = vsel %vm914, %v937, 0
        %942 = vmatprep.subr.bf16.mxu0 0
        %943 = vmatpush1.bf16.msra.mxu0 %v938
        %944 = vmatprep.subr.bf16.mxu0 0
        %945 = vmatpush1.bf16.msra.mxu0 0
        %946 = vmatprep.subr.bf16.mxu0 0
        %947 = vmatpush1.bf16.msra.mxu0 0
        %948 = vmatprep.subr.bf16.mxu0 0
        %949 = vmatpush1.bf16.msra.mxu0 0
        %950 = vmatprep.subr.bf16.mxu0 0
        %951 = vmatpush1.bf16.msra.mxu0 0
        %952 = vmatprep.subr.bf16.mxu0 0
        %953 = vmatpush1.bf16.msra.mxu0 0
        %954 = vmatprep.subr.bf16.mxu0 0
        %955 = vmatpush1.bf16.msra.mxu0 0
        %956 = vmatprep.subr.bf16.mxu0 0
        %957 = vmatpush1.bf16.msra.mxu0 0
        %958 = vmatprep.subr.bf16.mxu0 0
        %959 = vmatpush1.bf16.msra.mxu0 0
        %960 = vmatprep.subr.bf16.mxu0 0
        %961 = vmatpush1.bf16.msra.mxu0 0
        %962 = vmatprep.subr.bf16.mxu0 0
        %963 = vmatpush1.bf16.msra.mxu0 0
        %964 = vmatprep.subr.bf16.mxu0 0
        %965 = vmatpush1.bf16.msra.mxu0 0
        %966 = vmatprep.subr.bf16.mxu0 0
        %967 = vmatpush1.bf16.msra.mxu0 0
        %968 = vmatprep.subr.bf16.mxu0 0
        %969 = vmatpush1.bf16.msra.mxu0 0
        %970 = vmatprep.subr.bf16.mxu0 0
        %971 = vmatpush1.bf16.msra.mxu0 0
        %972 = vmatprep.subr.bf16.mxu0 0
        %973 = vmatpush1.bf16.msra.mxu0 0
        %974 = vmatprep.mubr.bf16.mxu0 0
        %975 = vmatmul.mubr.bf16.gmra.mrb[0].mxu0 %v940
        %v976 = vpop.f32.mrb[0].mxu0
        %v977 = vadd.f32 0.0, %v976
        %v978 = vpop.f32.mrb[0].mxu0
        %v979 = vpop.f32.mrb[0].mxu0
        %v980 = vadd.f32 0.0, %v979
        %v981 = vpop.f32.mrb[0].mxu0
        %982 = vdwg.mxu0
        %v983 = vpack.c.bf16 %v980, %v977
        %s984 = smul.u32 %s529, 8
        %s985 = smul.addr %s984, 4
        %s986 = scalar_lea.vmem %s4, %s985
        %v987 = vld [vmem:[%s986] sm:$0xf]
        %v988 = vld [vmem:[%s986 + $0x4] sm:$0xf]
        %v989 = vld [vmem:[%s986 + $0x8] sm:$0xf]
        %v990 = vld [vmem:[%s986 + $0xc] sm:$0xf]
        %v991 = vld [vmem:[%s986 + $0x10] sm:$0xf]
        %v992 = vld [vmem:[%s986 + $0x14] sm:$0xf]
        %v993 = vld [vmem:[%s986 + $0x18] sm:$0xf]
        %v994 = vld [vmem:[%s986 + $0x1c] sm:$0xf]
        %v1003 = vunpack.c.l.b16 %v987
        %v1004 = vunpack.c.l.b16 %v988
        %v1005 = vunpack.c.l.b16 %v989
        %v1006 = vunpack.c.l.b16 %v990
        %v1007 = vunpack.c.l.b16 %v991
        %v1008 = vunpack.c.l.b16 %v992
        %v1009 = vunpack.c.l.b16 %v993
        %v1010 = vunpack.c.l.b16 %v994
        %v1011 = vpack.c.b16 %v1004, %v1003
        %v1012 = vpack.c.b16 %v1006, %v1005
        %v1013 = vpack.c.b16 %v1008, %v1007
        %v1014 = vpack.c.b16 %v1010, %v1009
        %v1020 = vsel %vm866, %v983, 0
        %1022 = vmatprep.subr.bf16.mxu0 0
        %1023 = vmatpush1.bf16.msra.mxu0 %v1011
        %1024 = vmatprep.subr.bf16.mxu0 0
        %1025 = vmatpush1.bf16.msra.mxu0 %v1012
        %1026 = vmatprep.subr.bf16.mxu0 0
        %1027 = vmatpush1.bf16.msra.mxu0 %v1013
        %1028 = vmatprep.subr.bf16.mxu0 0
        %1029 = vmatpush1.bf16.msra.mxu0 %v1014
        %1030 = vmatprep.subr.bf16.mxu0 0
        %1031 = vmatpush1.bf16.msra.mxu0 0
        %1032 = vmatprep.subr.bf16.mxu0 0
        %1033 = vmatpush1.bf16.msra.mxu0 0
        %1034 = vmatprep.subr.bf16.mxu0 0
        %1035 = vmatpush1.bf16.msra.mxu0 0
        %1036 = vmatprep.subr.bf16.mxu0 0
        %1037 = vmatpush1.bf16.msra.mxu0 0
        %1038 = vmatprep.subr.bf16.mxu0 0
        %1039 = vmatpush1.bf16.msra.mxu0 0
        %1040 = vmatprep.subr.bf16.mxu0 0
        %1041 = vmatpush1.bf16.msra.mxu0 0
        %1042 = vmatprep.subr.bf16.mxu0 0
        %1043 = vmatpush1.bf16.msra.mxu0 0
        %1044 = vmatprep.subr.bf16.mxu0 0
        %1045 = vmatpush1.bf16.msra.mxu0 0
        %1046 = vmatprep.subr.bf16.mxu0 0
        %1047 = vmatpush1.bf16.msra.mxu0 0
        %1048 = vmatprep.subr.bf16.mxu0 0
        %1049 = vmatpush1.bf16.msra.mxu0 0
        %1050 = vmatprep.subr.bf16.mxu0 0
        %1051 = vmatpush1.bf16.msra.mxu0 0
        %1052 = vmatprep.subr.bf16.mxu0 0
        %1053 = vmatpush1.bf16.msra.mxu0 0
        %1054 = vmatprep.mubr.bf16.mxu0 0
        %1055 = vmatmul.mubr.bf16.gmra.mrb[0].mxu0 %v1020
        %v1056 = vpop.f32.mrb[0].mxu0
        %v1057 = vadd.f32 0.0, %v1056
        %v1058 = vpop.f32.mrb[0].mxu0
        %v1059 = vpop.f32.mrb[0].mxu0
        %v1060 = vadd.f32 0.0, %v1059
        %v1061 = vpop.f32.mrb[0].mxu0
        %1062 = vdwg.mxu0
        %v1063 = vadd.f32 %v534, %v1057
        %v1064 = vadd.f32 %v535, %v1060
      $region89: #{transformer_layer.1} parent=83 // loop_footer
        %s533 = sadd.s32 1, %s529
      $region90: #{transformer_layer.1} parent=83 // loop_footer_branch
        %528 = sbr.rel target = $region86
      $region91: #{transformer_layer.1} parent=83 // loop_exit
        _
      %v1065 = vld [vmem:[%s5] sm:$0x1]
      %v1067 = vlaneseq
      %v1068 = vshrl.u32 %v1067, 7
      %v1069 = vsub.s32 0, %v1068
      %v1070 = vrot.slane %v1065, %v1069
      %v1072 = vadd.f32 %v534, %v1070
      %v1073 = vadd.f32 %v535, %v1070
      %v1074 = vmul.f32 %v1072, 2.0
      %v1075 = vmul.f32 %v1073, 2.0
      %v1076 = vld [vmem:[%s6] sm:$0x1]
      %v1077 = vld [vmem:[%s7] sm:$0x1]
      %1078 = vadd.xlane.f32.xlu0 %v1074
      %v1079 = vpop.xlane.xlu0 %1078
      %1080 = vadd.xlane.f32.xlu0 %v1075
      %v1081 = vpop.xlane.xlu0 %1080
      %v1082 = vrcp.pop 128.0
      %v1083 = vmul.f32 %v1079, %v1082
      %v1084 = vmul.f32 %v1081, %v1082
      %v1085 = vsub.f32 %v1074, %v1083
      %v1086 = vsub.f32 %v1075, %v1084
      %v1087 = vmul.f32 %v1085, %v1085
      %v1088 = vmul.f32 %v1086, %v1086
      %1089 = vadd.xlane.f32.xlu0 %v1087
      %v1090 = vpop.xlane.xlu0 %1089
      %1091 = vadd.xlane.f32.xlu0 %v1088
      %v1092 = vpop.xlane.xlu0 %1091
      %v1093 = vmul.f32 %v1090, %v1082
      %v1094 = vmul.f32 %v1092, %v1082
      %v1095 = vadd.f32 %v1093, 1e-05
      %v1096 = vadd.f32 %v1094, 1e-05
      %v1097 = vrsqrt.pop %v1095
      %v1098 = vrsqrt.pop %v1096
      %v1099 = vmul.f32 %v1085, %v1097
      %v1100 = vmul.f32 %v1086, %v1098
      %v1102 = vlaneseq
      %v1103 = vshrl.u32 %v1102, 7
      %v1104 = vsub.s32 0, %v1103
      %v1105 = vrot.slane %v1076, %v1104
      %v1107 = vmul.f32 %v1099, %v1105
      %v1108 = vmul.f32 %v1100, %v1105
      %v1110 = vlaneseq
      %v1111 = vshrl.u32 %v1110, 7
      %v1112 = vsub.s32 0, %v1111
      %v1113 = vrot.slane %v1077, %v1112
      %v1115 = vadd.f32 %v1107, %v1113
      %v1116 = vadd.f32 %v1108, %v1113
      %v1117 = vpack.c.bf16 %v1116, %v1115
      %v1118 = vld [vmem:[%s8] sm:$0xff]
      %v1119 = vld [vmem:[%s8 + $0x8] sm:$0xff]
      %v1120 = vld [vmem:[%s8 + $0x10] sm:$0xff]
      %v1121 = vld [vmem:[%s8 + $0x18] sm:$0xff]
      %v1122 = vld [vmem:[%s8 + $0x20] sm:$0xff]
      %v1123 = vld [vmem:[%s8 + $0x28] sm:$0xff]
      %v1124 = vld [vmem:[%s8 + $0x30] sm:$0xff]
      %v1125 = vld [vmem:[%s8 + $0x38] sm:$0xff]
      %v1126 = vld [vmem:[%s8 + $0x40] sm:$0xff]
      %v1127 = vld [vmem:[%s8 + $0x48] sm:$0xff]
      %v1128 = vld [vmem:[%s8 + $0x50] sm:$0xff]
      %v1129 = vld [vmem:[%s8 + $0x58] sm:$0xff]
      %v1130 = vld [vmem:[%s8 + $0x60] sm:$0xff]
      %v1131 = vld [vmem:[%s8 + $0x68] sm:$0xff]
      %v1132 = vld [vmem:[%s8 + $0x70] sm:$0xff]
      %v1133 = vld [vmem:[%s8 + $0x78] sm:$0xff]
      %v1134 = vld [vmem:[%s8 + $0x80] sm:$0xff]
      %v1135 = vld [vmem:[%s8 + $0x88] sm:$0xff]
      %v1136 = vld [vmem:[%s8 + $0x90] sm:$0xff]
      %v1137 = vld [vmem:[%s8 + $0x98] sm:$0xff]
      %v1138 = vld [vmem:[%s8 + $0xa0] sm:$0xff]
      %v1139 = vld [vmem:[%s8 + $0xa8] sm:$0xff]
      %v1140 = vld [vmem:[%s8 + $0xb0] sm:$0xff]
      %v1141 = vld [vmem:[%s8 + $0xb8] sm:$0xff]
      %v1142 = vld [vmem:[%s8 + $0xc0] sm:$0xff]
      %v1143 = vld [vmem:[%s8 + $0xc8] sm:$0xff]
      %v1144 = vld [vmem:[%s8 + $0xd0] sm:$0xff]
      %v1145 = vld [vmem:[%s8 + $0xd8] sm:$0xff]
      %v1146 = vld [vmem:[%s8 + $0xe0] sm:$0xff]
      %v1147 = vld [vmem:[%s8 + $0xe8] sm:$0xff]
      %v1148 = vld [vmem:[%s8 + $0xf0] sm:$0xff]
      %v1149 = vld [vmem:[%s8 + $0xf8] sm:$0xff]
      %v1150 = vld [vmem:[%s10] sm:$0xf]
      %v1152 = vlaneseq
      %v1153 = vshrl.u32 %v1152, 7
      %v1154 = vsub.s32 0, %v1153
      %v1155 = vrot.slane %v1150, %v1154
      %v1156 = vlaneseq
      %v1157 = vshrl.u32 %v1156, 7
      %v1158 = vsub.s32 1, %v1157
      %v1159 = vrot.slane %v1150, %v1158
      %v1160 = vlaneseq
      %v1161 = vshrl.u32 %v1160, 7
      %v1162 = vsub.s32 2, %v1161
      %v1163 = vrot.slane %v1150, %v1162
      %v1164 = vlaneseq
      %v1165 = vshrl.u32 %v1164, 7
      %v1166 = vsub.s32 3, %v1165
      %v1167 = vrot.slane %v1150, %v1166
      %v1204 = vunpack.c.l.b16 %v1118
      %v1205 = vunpack.c.h.b16 %v1118
      %v1206 = vunpack.c.l.b16 %v1119
      %v1207 = vunpack.c.h.b16 %v1119
      %v1208 = vunpack.c.l.b16 %v1120
      %v1209 = vunpack.c.h.b16 %v1120
      %v1210 = vunpack.c.l.b16 %v1121
      %v1211 = vunpack.c.h.b16 %v1121
      %v1212 = vunpack.c.l.b16 %v1122
      %v1213 = vunpack.c.h.b16 %v1122
      %v1214 = vunpack.c.l.b16 %v1123
      %v1215 = vunpack.c.h.b16 %v1123
      %v1216 = vunpack.c.l.b16 %v1124
      %v1217 = vunpack.c.h.b16 %v1124
      %v1218 = vunpack.c.l.b16 %v1125
      %v1219 = vunpack.c.h.b16 %v1125
      %v1220 = vunpack.c.l.b16 %v1126
      %v1221 = vunpack.c.h.b16 %v1126
      %v1222 = vunpack.c.l.b16 %v1127
      %v1223 = vunpack.c.h.b16 %v1127
      %v1224 = vunpack.c.l.b16 %v1128
      %v1225 = vunpack.c.h.b16 %v1128
      %v1226 = vunpack.c.l.b16 %v1129
      %v1227 = vunpack.c.h.b16 %v1129
      %v1228 = vunpack.c.l.b16 %v1130
      %v1229 = vunpack.c.h.b16 %v1130
      %v1230 = vunpack.c.l.b16 %v1131
      %v1231 = vunpack.c.h.b16 %v1131
      %v1232 = vunpack.c.l.b16 %v1132
      %v1233 = vunpack.c.h.b16 %v1132
      %v1234 = vunpack.c.l.b16 %v1133
      %v1235 = vunpack.c.h.b16 %v1133
      %v1236 = vunpack.c.l.b16 %v1134
      %v1237 = vunpack.c.h.b16 %v1134
      %v1238 = vunpack.c.l.b16 %v1135
      %v1239 = vunpack.c.h.b16 %v1135
      %v1240 = vunpack.c.l.b16 %v1136
      %v1241 = vunpack.c.h.b16 %v1136
      %v1242 = vunpack.c.l.b16 %v1137
      %v1243 = vunpack.c.h.b16 %v1137
      %v1244 = vunpack.c.l.b16 %v1138
      %v1245 = vunpack.c.h.b16 %v1138
      %v1246 = vunpack.c.l.b16 %v1139
      %v1247 = vunpack.c.h.b16 %v1139
      %v1248 = vunpack.c.l.b16 %v1140
      %v1249 = vunpack.c.h.b16 %v1140
      %v1250 = vunpack.c.l.b16 %v1141
      %v1251 = vunpack.c.h.b16 %v1141
      %v1252 = vunpack.c.l.b16 %v1142
      %v1253 = vunpack.c.h.b16 %v1142
      %v1254 = vunpack.c.l.b16 %v1143
      %v1255 = vunpack.c.h.b16 %v1143
      %v1256 = vunpack.c.l.b16 %v1144
      %v1257 = vunpack.c.h.b16 %v1144
      %v1258 = vunpack.c.l.b16 %v1145
      %v1259 = vunpack.c.h.b16 %v1145
      %v1260 = vunpack.c.l.b16 %v1146
      %v1261 = vunpack.c.h.b16 %v1146
      %v1262 = vunpack.c.l.b16 %v1147
      %v1263 = vunpack.c.h.b16 %v1147
      %v1264 = vunpack.c.l.b16 %v1148
      %v1265 = vunpack.c.h.b16 %v1148
      %v1266 = vunpack.c.l.b16 %v1149
      %v1267 = vunpack.c.h.b16 %v1149
      %v1268 = vpack.c.b16 %v1208, %v1204
      %v1269 = vpack.c.b16 %v1209, %v1205
      %v1270 = vpack.c.b16 %v1210, %v1206
      %v1271 = vpack.c.b16 %v1211, %v1207
      %v1272 = vpack.c.b16 %v1216, %v1212
      %v1273 = vpack.c.b16 %v1217, %v1213
      %v1274 = vpack.c.b16 %v1218, %v1214
      %v1275 = vpack.c.b16 %v1219, %v1215
      %v1276 = vpack.c.b16 %v1224, %v1220
      %v1277 = vpack.c.b16 %v1225, %v1221
      %v1278 = vpack.c.b16 %v1226, %v1222
      %v1279 = vpack.c.b16 %v1227, %v1223
      %v1280 = vpack.c.b16 %v1232, %v1228
      %v1281 = vpack.c.b16 %v1233, %v1229
      %v1282 = vpack.c.b16 %v1234, %v1230
      %v1283 = vpack.c.b16 %v1235, %v1231
      %v1284 = vpack.c.b16 %v1240, %v1236
      %v1285 = vpack.c.b16 %v1241, %v1237
      %v1286 = vpack.c.b16 %v1242, %v1238
      %v1287 = vpack.c.b16 %v1243, %v1239
      %v1288 = vpack.c.b16 %v1248, %v1244
      %v1289 = vpack.c.b16 %v1249, %v1245
      %v1290 = vpack.c.b16 %v1250, %v1246
      %v1291 = vpack.c.b16 %v1251, %v1247
      %v1292 = vpack.c.b16 %v1256, %v1252
      %v1293 = vpack.c.b16 %v1257, %v1253
      %v1294 = vpack.c.b16 %v1258, %v1254
      %v1295 = vpack.c.b16 %v1259, %v1255
      %v1296 = vpack.c.b16 %v1264, %v1260
      %v1297 = vpack.c.b16 %v1265, %v1261
      %v1298 = vpack.c.b16 %v1266, %v1262
      %v1299 = vpack.c.b16 %v1267, %v1263
      %1332 = vmatprep.subr.bf16.mxu0 %v1269
      %1333 = vmatpush1.bf16.msra.mxu0 %v1268
      %1334 = vmatprep.subr.bf16.mxu0 %v1273
      %1335 = vmatpush1.bf16.msra.mxu0 %v1272
      %1336 = vmatprep.subr.bf16.mxu0 %v1277
      %1337 = vmatpush1.bf16.msra.mxu0 %v1276
      %1338 = vmatprep.subr.bf16.mxu0 %v1281
      %1339 = vmatpush1.bf16.msra.mxu0 %v1280
      %1340 = vmatprep.subr.bf16.mxu0 %v1285
      %1341 = vmatpush1.bf16.msra.mxu0 %v1284
      %1342 = vmatprep.subr.bf16.mxu0 %v1289
      %1343 = vmatpush1.bf16.msra.mxu0 %v1288
      %1344 = vmatprep.subr.bf16.mxu0 %v1293
      %1345 = vmatpush1.bf16.msra.mxu0 %v1292
      %1346 = vmatprep.subr.bf16.mxu0 %v1297
      %1347 = vmatpush1.bf16.msra.mxu0 %v1296
      %1348 = vmatprep.subr.bf16.mxu0 0
      %1349 = vmatpush1.bf16.msra.mxu0 0
      %1350 = vmatprep.subr.bf16.mxu0 0
      %1351 = vmatpush1.bf16.msra.mxu0 0
      %1352 = vmatprep.subr.bf16.mxu0 0
      %1353 = vmatpush1.bf16.msra.mxu0 0
      %1354 = vmatprep.subr.bf16.mxu0 0
      %1355 = vmatpush1.bf16.msra.mxu0 0
      %1356 = vmatprep.subr.bf16.mxu0 0
      %1357 = vmatpush1.bf16.msra.mxu0 0
      %1358 = vmatprep.subr.bf16.mxu0 0
      %1359 = vmatpush1.bf16.msra.mxu0 0
      %1360 = vmatprep.subr.bf16.mxu0 0
      %1361 = vmatpush1.bf16.msra.mxu0 0
      %1362 = vmatprep.subr.bf16.mxu0 0
      %1363 = vmatpush1.bf16.msra.mxu0 0
      %1364 = vmatprep.mubr.bf16.mxu0 0
      %1365 = vmatmul.mubr.bf16.gmra.mrb[0].mxu0 %v1117
      %v1366 = vpop.f32.mrb[0].mxu0
      %v1367 = vadd.f32 %v1155, %v1366
      %v1368 = vpop.f32.mrb[0].mxu0
      %v1369 = vadd.f32 %v1159, %v1368
      %v1370 = vpop.f32.mrb[0].mxu0
      %v1371 = vadd.f32 %v1155, %v1370
      %v1372 = vpop.f32.mrb[0].mxu0
      %v1373 = vadd.f32 %v1159, %v1372
      %1374 = vdwg.mxu0
      %1375 = vmatprep.subr.bf16.mxu0 %v1271
      %1376 = vmatpush1.bf16.msra.mxu0 %v1270
      %1377 = vmatprep.subr.bf16.mxu0 %v1275
      %1378 = vmatpush1.bf16.msra.mxu0 %v1274
      %1379 = vmatprep.subr.bf16.mxu0 %v1279
      %1380 = vmatpush1.bf16.msra.mxu0 %v1278
      %1381 = vmatprep.subr.bf16.mxu0 %v1283
      %1382 = vmatpush1.bf16.msra.mxu0 %v1282
      %1383 = vmatprep.subr.bf16.mxu0 %v1287
      %1384 = vmatpush1.bf16.msra.mxu0 %v1286
      %1385 = vmatprep.subr.bf16.mxu0 %v1291
      %1386 = vmatpush1.bf16.msra.mxu0 %v1290
      %1387 = vmatprep.subr.bf16.mxu0 %v1295
      %1388 = vmatpush1.bf16.msra.mxu0 %v1294
      %1389 = vmatprep.subr.bf16.mxu0 %v1299
      %1390 = vmatpush1.bf16.msra.mxu0 %v1298
      %1391 = vmatprep.subr.bf16.mxu0 0
      %1392 = vmatpush1.bf16.msra.mxu0 0
      %1393 = vmatprep.subr.bf16.mxu0 0
      %1394 = vmatpush1.bf16.msra.mxu0 0
      %1395 = vmatprep.subr.bf16.mxu0 0
      %1396 = vmatpush1.bf16.msra.mxu0 0
      %1397 = vmatprep.subr.bf16.mxu0 0
      %1398 = vmatpush1.bf16.msra.mxu0 0
      %1399 = vmatprep.subr.bf16.mxu0 0
      %1400 = vmatpush1.bf16.msra.mxu0 0
      %1401 = vmatprep.subr.bf16.mxu0 0
      %1402 = vmatpush1.bf16.msra.mxu0 0
      %1403 = vmatprep.subr.bf16.mxu0 0
      %1404 = vmatpush1.bf16.msra.mxu0 0
      %1405 = vmatprep.subr.bf16.mxu0 0
      %1406 = vmatpush1.bf16.msra.mxu0 0
      %1407 = vmatprep.mubr.bf16.mxu0 0
      %1408 = vmatmul.mubr.bf16.gmra.mrb[0].mxu0 %v1117
      %v1409 = vpop.f32.mrb[0].mxu0
      %v1410 = vadd.f32 %v1163, %v1409
      %v1411 = vpop.f32.mrb[0].mxu0
      %v1412 = vadd.f32 %v1167, %v1411
      %v1413 = vpop.f32.mrb[0].mxu0
      %v1414 = vadd.f32 %v1163, %v1413
      %v1415 = vpop.f32.mrb[0].mxu0
      %v1416 = vadd.f32 %v1167, %v1415
      %1417 = vdwg.mxu0
      %v1418 = vld [vmem:[%s9] sm:$0xff]
      %v1419 = vld [vmem:[%s9 + $0x8] sm:$0xff]
      %v1420 = vld [vmem:[%s9 + $0x10] sm:$0xff]
      %v1421 = vld [vmem:[%s9 + $0x18] sm:$0xff]
      %v1422 = vld [vmem:[%s9 + $0x20] sm:$0xff]
      %v1423 = vld [vmem:[%s9 + $0x28] sm:$0xff]
      %v1424 = vld [vmem:[%s9 + $0x30] sm:$0xff]
      %v1425 = vld [vmem:[%s9 + $0x38] sm:$0xff]
      %v1426 = vld [vmem:[%s9 + $0x40] sm:$0xff]
      %v1427 = vld [vmem:[%s9 + $0x48] sm:$0xff]
      %v1428 = vld [vmem:[%s9 + $0x50] sm:$0xff]
      %v1429 = vld [vmem:[%s9 + $0x58] sm:$0xff]
      %v1430 = vld [vmem:[%s9 + $0x60] sm:$0xff]
      %v1431 = vld [vmem:[%s9 + $0x68] sm:$0xff]
      %v1432 = vld [vmem:[%s9 + $0x70] sm:$0xff]
      %v1433 = vld [vmem:[%s9 + $0x78] sm:$0xff]
      %v1434 = vld [vmem:[%s9 + $0x80] sm:$0xff]
      %v1435 = vld [vmem:[%s9 + $0x88] sm:$0xff]
      %v1436 = vld [vmem:[%s9 + $0x90] sm:$0xff]
      %v1437 = vld [vmem:[%s9 + $0x98] sm:$0xff]
      %v1438 = vld [vmem:[%s9 + $0xa0] sm:$0xff]
      %v1439 = vld [vmem:[%s9 + $0xa8] sm:$0xff]
      %v1440 = vld [vmem:[%s9 + $0xb0] sm:$0xff]
      %v1441 = vld [vmem:[%s9 + $0xb8] sm:$0xff]
      %v1442 = vld [vmem:[%s9 + $0xc0] sm:$0xff]
      %v1443 = vld [vmem:[%s9 + $0xc8] sm:$0xff]
      %v1444 = vld [vmem:[%s9 + $0xd0] sm:$0xff]
      %v1445 = vld [vmem:[%s9 + $0xd8] sm:$0xff]
      %v1446 = vld [vmem:[%s9 + $0xe0] sm:$0xff]
      %v1447 = vld [vmem:[%s9 + $0xe8] sm:$0xff]
      %v1448 = vld [vmem:[%s9 + $0xf0] sm:$0xff]
      %v1449 = vld [vmem:[%s9 + $0xf8] sm:$0xff]
      %v1450 = vld [vmem:[%s11] sm:$0xf]
      %v1452 = vlaneseq
      %v1453 = vshrl.u32 %v1452, 7
      %v1454 = vsub.s32 0, %v1453
      %v1455 = vrot.slane %v1450, %v1454
      %v1456 = vlaneseq
      %v1457 = vshrl.u32 %v1456, 7
      %v1458 = vsub.s32 1, %v1457
      %v1459 = vrot.slane %v1450, %v1458
      %v1460 = vlaneseq
      %v1461 = vshrl.u32 %v1460, 7
      %v1462 = vsub.s32 2, %v1461
      %v1463 = vrot.slane %v1450, %v1462
      %v1464 = vlaneseq
      %v1465 = vshrl.u32 %v1464, 7
      %v1466 = vsub.s32 3, %v1465
      %v1467 = vrot.slane %v1450, %v1466
      %v1504 = vunpack.c.l.b16 %v1418
      %v1505 = vunpack.c.h.b16 %v1418
      %v1506 = vunpack.c.l.b16 %v1419
      %v1507 = vunpack.c.h.b16 %v1419
      %v1508 = vunpack.c.l.b16 %v1420
      %v1509 = vunpack.c.h.b16 %v1420
      %v1510 = vunpack.c.l.b16 %v1421
      %v1511 = vunpack.c.h.b16 %v1421
      %v1512 = vunpack.c.l.b16 %v1422
      %v1513 = vunpack.c.h.b16 %v1422
      %v1514 = vunpack.c.l.b16 %v1423
      %v1515 = vunpack.c.h.b16 %v1423
      %v1516 = vunpack.c.l.b16 %v1424
      %v1517 = vunpack.c.h.b16 %v1424
      %v1518 = vunpack.c.l.b16 %v1425
      %v1519 = vunpack.c.h.b16 %v1425
      %v1520 = vunpack.c.l.b16 %v1426
      %v1521 = vunpack.c.h.b16 %v1426
      %v1522 = vunpack.c.l.b16 %v1427
      %v1523 = vunpack.c.h.b16 %v1427
      %v1524 = vunpack.c.l.b16 %v1428
      %v1525 = vunpack.c.h.b16 %v1428
      %v1526 = vunpack.c.l.b16 %v1429
      %v1527 = vunpack.c.h.b16 %v1429
      %v1528 = vunpack.c.l.b16 %v1430
      %v1529 = vunpack.c.h.b16 %v1430
      %v1530 = vunpack.c.l.b16 %v1431
      %v1531 = vunpack.c.h.b16 %v1431
      %v1532 = vunpack.c.l.b16 %v1432
      %v1533 = vunpack.c.h.b16 %v1432
      %v1534 = vunpack.c.l.b16 %v1433
      %v1535 = vunpack.c.h.b16 %v1433
      %v1536 = vunpack.c.l.b16 %v1434
      %v1537 = vunpack.c.h.b16 %v1434
      %v1538 = vunpack.c.l.b16 %v1435
      %v1539 = vunpack.c.h.b16 %v1435
      %v1540 = vunpack.c.l.b16 %v1436
      %v1541 = vunpack.c.h.b16 %v1436
      %v1542 = vunpack.c.l.b16 %v1437
      %v1543 = vunpack.c.h.b16 %v1437
      %v1544 = vunpack.c.l.b16 %v1438
      %v1545 = vunpack.c.h.b16 %v1438
      %v1546 = vunpack.c.l.b16 %v1439
      %v1547 = vunpack.c.h.b16 %v1439
      %v1548 = vunpack.c.l.b16 %v1440
      %v1549 = vunpack.c.h.b16 %v1440
      %v1550 = vunpack.c.l.b16 %v1441
      %v1551 = vunpack.c.h.b16 %v1441
      %v1552 = vunpack.c.l.b16 %v1442
      %v1553 = vunpack.c.h.b16 %v1442
      %v1554 = vunpack.c.l.b16 %v1443
      %v1555 = vunpack.c.h.b16 %v1443
      %v1556 = vunpack.c.l.b16 %v1444
      %v1557 = vunpack.c.h.b16 %v1444
      %v1558 = vunpack.c.l.b16 %v1445
      %v1559 = vunpack.c.h.b16 %v1445
      %v1560 = vunpack.c.l.b16 %v1446
      %v1561 = vunpack.c.h.b16 %v1446
      %v1562 = vunpack.c.l.b16 %v1447
      %v1563 = vunpack.c.h.b16 %v1447
      %v1564 = vunpack.c.l.b16 %v1448
      %v1565 = vunpack.c.h.b16 %v1448
      %v1566 = vunpack.c.l.b16 %v1449
      %v1567 = vunpack.c.h.b16 %v1449
      %v1568 = vpack.c.b16 %v1508, %v1504
      %v1569 = vpack.c.b16 %v1509, %v1505
      %v1570 = vpack.c.b16 %v1510, %v1506
      %v1571 = vpack.c.b16 %v1511, %v1507
      %v1572 = vpack.c.b16 %v1516, %v1512
      %v1573 = vpack.c.b16 %v1517, %v1513
      %v1574 = vpack.c.b16 %v1518, %v1514
      %v1575 = vpack.c.b16 %v1519, %v1515
      %v1576 = vpack.c.b16 %v1524, %v1520
      %v1577 = vpack.c.b16 %v1525, %v1521
      %v1578 = vpack.c.b16 %v1526, %v1522
      %v1579 = vpack.c.b16 %v1527, %v1523
      %v1580 = vpack.c.b16 %v1532, %v1528
      %v1581 = vpack.c.b16 %v1533, %v1529
      %v1582 = vpack.c.b16 %v1534, %v1530
      %v1583 = vpack.c.b16 %v1535, %v1531
      %v1584 = vpack.c.b16 %v1540, %v1536
      %v1585 = vpack.c.b16 %v1541, %v1537
      %v1586 = vpack.c.b16 %v1542, %v1538
      %v1587 = vpack.c.b16 %v1543, %v1539
      %v1588 = vpack.c.b16 %v1548, %v1544
      %v1589 = vpack.c.b16 %v1549, %v1545
      %v1590 = vpack.c.b16 %v1550, %v1546
      %v1591 = vpack.c.b16 %v1551, %v1547
      %v1592 = vpack.c.b16 %v1556, %v1552
      %v1593 = vpack.c.b16 %v1557, %v1553
      %v1594 = vpack.c.b16 %v1558, %v1554
      %v1595 = vpack.c.b16 %v1559, %v1555
      %v1596 = vpack.c.b16 %v1564, %v1560
      %v1597 = vpack.c.b16 %v1565, %v1561
      %v1598 = vpack.c.b16 %v1566, %v1562
      %v1599 = vpack.c.b16 %v1567, %v1563
      %1632 = vmatprep.subr.bf16.mxu0 %v1569
      %1633 = vmatpush1.bf16.msra.mxu0 %v1568
      %1634 = vmatprep.subr.bf16.mxu0 %v1573
      %1635 = vmatpush1.bf16.msra.mxu0 %v1572
      %1636 = vmatprep.subr.bf16.mxu0 %v1577
      %1637 = vmatpush1.bf16.msra.mxu0 %v1576
      %1638 = vmatprep.subr.bf16.mxu0 %v1581
      %1639 = vmatpush1.bf16.msra.mxu0 %v1580
      %1640 = vmatprep.subr.bf16.mxu0 %v1585
      %1641 = vmatpush1.bf16.msra.mxu0 %v1584
      %1642 = vmatprep.subr.bf16.mxu0 %v1589
      %1643 = vmatpush1.bf16.msra.mxu0 %v1588
      %1644 = vmatprep.subr.bf16.mxu0 %v1593
      %1645 = vmatpush1.bf16.msra.mxu0 %v1592
      %1646 = vmatprep.subr.bf16.mxu0 %v1597
      %1647 = vmatpush1.bf16.msra.mxu0 %v1596
      %1648 = vmatprep.subr.bf16.mxu0 0
      %1649 = vmatpush1.bf16.msra.mxu0 0
      %1650 = vmatprep.subr.bf16.mxu0 0
      %1651 = vmatpush1.bf16.msra.mxu0 0
      %1652 = vmatprep.subr.bf16.mxu0 0
      %1653 = vmatpush1.bf16.msra.mxu0 0
      %1654 = vmatprep.subr.bf16.mxu0 0
      %1655 = vmatpush1.bf16.msra.mxu0 0
      %1656 = vmatprep.subr.bf16.mxu0 0
      %1657 = vmatpush1.bf16.msra.mxu0 0
      %1658 = vmatprep.subr.bf16.mxu0 0
      %1659 = vmatpush1.bf16.msra.mxu0 0
      %1660 = vmatprep.subr.bf16.mxu0 0
      %1661 = vmatpush1.bf16.msra.mxu0 0
      %1662 = vmatprep.subr.bf16.mxu0 0
      %1663 = vmatpush1.bf16.msra.mxu0 0
      %1664 = vmatprep.mubr.bf16.mxu0 0
      %1665 = vmatmul.mubr.bf16.gmra.mrb[0].mxu0 %v1117
      %v1666 = vpop.f32.mrb[0].mxu0
      %v1667 = vadd.f32 %v1455, %v1666
      %v1668 = vpop.f32.mrb[0].mxu0
      %v1669 = vadd.f32 %v1459, %v1668
      %v1670 = vpop.f32.mrb[0].mxu0
      %v1671 = vadd.f32 %v1455, %v1670
      %v1672 = vpop.f32.mrb[0].mxu0
      %v1673 = vadd.f32 %v1459, %v1672
      %1674 = vdwg.mxu0
      %1675 = vmatprep.subr.bf16.mxu0 %v1571
      %1676 = vmatpush1.bf16.msra.mxu0 %v1570
      %1677 = vmatprep.subr.bf16.mxu0 %v1575
      %1678 = vmatpush1.bf16.msra.mxu0 %v1574
      %1679 = vmatprep.subr.bf16.mxu0 %v1579
      %1680 = vmatpush1.bf16.msra.mxu0 %v1578
      %1681 = vmatprep.subr.bf16.mxu0 %v1583
      %1682 = vmatpush1.bf16.msra.mxu0 %v1582
      %1683 = vmatprep.subr.bf16.mxu0 %v1587
      %1684 = vmatpush1.bf16.msra.mxu0 %v1586
      %1685 = vmatprep.subr.bf16.mxu0 %v1591
      %1686 = vmatpush1.bf16.msra.mxu0 %v1590
      %1687 = vmatprep.subr.bf16.mxu0 %v1595
      %1688 = vmatpush1.bf16.msra.mxu0 %v1594
      %1689 = vmatprep.subr.bf16.mxu0 %v1599
      %1690 = vmatpush1.bf16.msra.mxu0 %v1598
      %1691 = vmatprep.subr.bf16.mxu0 0
      %1692 = vmatpush1.bf16.msra.mxu0 0
      %1693 = vmatprep.subr.bf16.mxu0 0
      %1694 = vmatpush1.bf16.msra.mxu0 0
      %1695 = vmatprep.subr.bf16.mxu0 0
      %1696 = vmatpush1.bf16.msra.mxu0 0
      %1697 = vmatprep.subr.bf16.mxu0 0
      %1698 = vmatpush1.bf16.msra.mxu0 0
      %1699 = vmatprep.subr.bf16.mxu0 0
      %1700 = vmatpush1.bf16.msra.mxu0 0
      %1701 = vmatprep.subr.bf16.mxu0 0
      %1702 = vmatpush1.bf16.msra.mxu0 0
      %1703 = vmatprep.subr.bf16.mxu0 0
      %1704 = vmatpush1.bf16.msra.mxu0 0
      %1705 = vmatprep.subr.bf16.mxu0 0
      %1706 = vmatpush1.bf16.msra.mxu0 0
      %1707 = vmatprep.mubr.bf16.mxu0 0
      %1708 = vmatmul.mubr.bf16.gmra.mrb[0].mxu0 %v1117
      %v1709 = vpop.f32.mrb[0].mxu0
      %v1710 = vadd.f32 %v1463, %v1709
      %v1711 = vpop.f32.mrb[0].mxu0
      %v1712 = vadd.f32 %v1467, %v1711
      %v1713 = vpop.f32.mrb[0].mxu0
      %v1714 = vadd.f32 %v1463, %v1713
      %v1715 = vpop.f32.mrb[0].mxu0
      %v1716 = vadd.f32 %v1467, %v1715
      %1717 = vdwg.mxu0
      %v1718 = vmul.f32 %v1667, 0.5
      %v1719 = vmul.f32 %v1669, 0.5
      %v1720 = vmul.f32 %v1710, 0.5
      %v1721 = vmul.f32 %v1712, 0.5
      %v1722 = vmul.f32 %v1671, 0.5
      %v1723 = vmul.f32 %v1673, 0.5
      %v1724 = vmul.f32 %v1714, 0.5
      %v1725 = vmul.f32 %v1716, 0.5
      %v1726 = vmul.f32 %v1667, 0.70710677
      %v1727 = vmul.f32 %v1669, 0.70710677
      %v1728 = vmul.f32 %v1710, 0.70710677
      %v1729 = vmul.f32 %v1712, 0.70710677
      %v1730 = vmul.f32 %v1671, 0.70710677
      %v1731 = vmul.f32 %v1673, 0.70710677
      %v1732 = vmul.f32 %v1714, 0.70710677
      %v1733 = vmul.f32 %v1716, 0.70710677
      %v1734 = vand.u32 2147483647, %v1726
      %v1735 = vand.u32 2147483647, %v1727
      %v1736 = vand.u32 2147483647, %v1728
      %v1737 = vand.u32 2147483647, %v1729
      %v1738 = vand.u32 2147483647, %v1730
      %v1739 = vand.u32 2147483647, %v1731
      %v1740 = vand.u32 2147483647, %v1732
      %v1741 = vand.u32 2147483647, %v1733
      %v1742 = vmul.f32 %v1734, 0.3275911
      %v1743 = vmul.f32 %v1735, 0.3275911
      %v1744 = vmul.f32 %v1736, 0.3275911
      %v1745 = vmul.f32 %v1737, 0.3275911
      %v1746 = vmul.f32 %v1738, 0.3275911
      %v1747 = vmul.f32 %v1739, 0.3275911
      %v1748 = vmul.f32 %v1740, 0.3275911
      %v1749 = vmul.f32 %v1741, 0.3275911
      %v1750 = vadd.f32 %v1742, 1.0
      %v1751 = vadd.f32 %v1743, 1.0
      %v1752 = vadd.f32 %v1744, 1.0
      %v1753 = vadd.f32 %v1745, 1.0
      %v1754 = vadd.f32 %v1746, 1.0
      %v1755 = vadd.f32 %v1747, 1.0
      %v1756 = vadd.f32 %v1748, 1.0
      %v1757 = vadd.f32 %v1749, 1.0
      %v1758 = vrcp.pop %v1750
      %v1759 = vrcp.pop %v1751
      %v1760 = vrcp.pop %v1752
      %v1761 = vrcp.pop %v1753
      %v1762 = vrcp.pop %v1754
      %v1763 = vrcp.pop %v1755
      %v1764 = vrcp.pop %v1756
      %v1765 = vrcp.pop %v1757
      %v1766 = vmul.f32 %v1758, 1.0614054
      %v1767 = vmul.f32 %v1759, 1.0614054
      %v1768 = vmul.f32 %v1760, 1.0614054
      %v1769 = vmul.f32 %v1761, 1.0614054
      %v1770 = vmul.f32 %v1762, 1.0614054
      %v1771 = vmul.f32 %v1763, 1.0614054
      %v1772 = vmul.f32 %v1764, 1.0614054
      %v1773 = vmul.f32 %v1765, 1.0614054
      %v1774 = vadd.f32 %v1766, -1.4531521
      %v1775 = vadd.f32 %v1767, -1.4531521
      %v1776 = vadd.f32 %v1768, -1.4531521
      %v1777 = vadd.f32 %v1769, -1.4531521
      %v1778 = vadd.f32 %v1770, -1.4531521
      %v1779 = vadd.f32 %v1771, -1.4531521
      %v1780 = vadd.f32 %v1772, -1.4531521
      %v1781 = vadd.f32 %v1773, -1.4531521
      %v1782 = vmul.f32 %v1758, %v1774
      %v1783 = vmul.f32 %v1759, %v1775
      %v1784 = vmul.f32 %v1760, %v1776
      %v1785 = vmul.f32 %v1761, %v1777
      %v1786 = vmul.f32 %v1762, %v1778
      %v1787 = vmul.f32 %v1763, %v1779
      %v1788 = vmul.f32 %v1764, %v1780
      %v1789 = vmul.f32 %v1765, %v1781
      %v1790 = vadd.f32 %v1782, 1.4214138
      %v1791 = vadd.f32 %v1783, 1.4214138
      %v1792 = vadd.f32 %v1784, 1.4214138
      %v1793 = vadd.f32 %v1785, 1.4214138
      %v1794 = vadd.f32 %v1786, 1.4214138
      %v1795 = vadd.f32 %v1787, 1.4214138
      %v1796 = vadd.f32 %v1788, 1.4214138
      %v1797 = vadd.f32 %v1789, 1.4214138
      %v1798 = vmul.f32 %v1758, %v1790
      %v1799 = vmul.f32 %v1759, %v1791
      %v1800 = vmul.f32 %v1760, %v1792
      %v1801 = vmul.f32 %v1761, %v1793
      %v1802 = vmul.f32 %v1762, %v1794
      %v1803 = vmul.f32 %v1763, %v1795
      %v1804 = vmul.f32 %v1764, %v1796
      %v1805 = vmul.f32 %v1765, %v1797
      %v1806 = vadd.f32 %v1798, -0.28449672
      %v1807 = vadd.f32 %v1799, -0.28449672
      %v1808 = vadd.f32 %v1800, -0.28449672
      %v1809 = vadd.f32 %v1801, -0.28449672
      %v1810 = vadd.f32 %v1802, -0.28449672
      %v1811 = vadd.f32 %v1803, -0.28449672
      %v1812 = vadd.f32 %v1804, -0.28449672
      %v1813 = vadd.f32 %v1805, -0.28449672
      %v1814 = vmul.f32 %v1758, %v1806
      %v1815 = vmul.f32 %v1759, %v1807
      %v1816 = vmul.f32 %v1760, %v1808
      %v1817 = vmul.f32 %v1761, %v1809
      %v1818 = vmul.f32 %v1762, %v1810
      %v1819 = vmul.f32 %v1763, %v1811
      %v1820 = vmul.f32 %v1764, %v1812
      %v1821 = vmul.f32 %v1765, %v1813
      %v1822 = vadd.f32 %v1814, 0.2548296
      %v1823 = vadd.f32 %v1815, 0.2548296
      %v1824 = vadd.f32 %v1816, 0.2548296
      %v1825 = vadd.f32 %v1817, 0.2548296
      %v1826 = vadd.f32 %v1818, 0.2548296
      %v1827 = vadd.f32 %v1819, 0.2548296
      %v1828 = vadd.f32 %v1820, 0.2548296
      %v1829 = vadd.f32 %v1821, 0.2548296
      %v1830 = vmul.f32 %v1758, %v1822
      %v1831 = vmul.f32 %v1759, %v1823
      %v1832 = vmul.f32 %v1760, %v1824
      %v1833 = vmul.f32 %v1761, %v1825
      %v1834 = vmul.f32 %v1762, %v1826
      %v1835 = vmul.f32 %v1763, %v1827
      %v1836 = vmul.f32 %v1764, %v1828
      %v1837 = vmul.f32 %v1765, %v1829
      %v1838 = vsub.f32 0.0, %v1734
      %v1839 = vsub.f32 0.0, %v1735
      %v1840 = vsub.f32 0.0, %v1736
      %v1841 = vsub.f32 0.0, %v1737
      %v1842 = vsub.f32 0.0, %v1738
      %v1843 = vsub.f32 0.0, %v1739
      %v1844 = vsub.f32 0.0, %v1740
      %v1845 = vsub.f32 0.0, %v1741
      %v1846 = vmul.f32 %v1838, %v1734
      %v1847 = vmul.f32 %v1839, %v1735
      %v1848 = vmul.f32 %v1840, %v1736
      %v1849 = vmul.f32 %v1841, %v1737
      %v1850 = vmul.f32 %v1842, %v1738
      %v1851 = vmul.f32 %v1843, %v1739
      %v1852 = vmul.f32 %v1844, %v1740
      %v1853 = vmul.f32 %v1845, %v1741
      %v1854 = vmul.f32 %v1846, 1.442695
      %v1855 = vpow.pop %v1854
      %v1856 = vmul.f32 %v1847, 1.442695
      %v1857 = vpow.pop %v1856
      %v1858 = vmul.f32 %v1848, 1.442695
      %v1859 = vpow.pop %v1858
      %v1860 = vmul.f32 %v1849, 1.442695
      %v1861 = vpow.pop %v1860
      %v1862 = vmul.f32 %v1850, 1.442695
      %v1863 = vpow.pop %v1862
      %v1864 = vmul.f32 %v1851, 1.442695
      %v1865 = vpow.pop %v1864
      %v1866 = vmul.f32 %v1852, 1.442695
      %v1867 = vpow.pop %v1866
      %v1868 = vmul.f32 %v1853, 1.442695
      %v1869 = vpow.pop %v1868
      %v1870 = vmul.f32 %v1830, %v1855
      %v1871 = vmul.f32 %v1831, %v1857
      %v1872 = vmul.f32 %v1832, %v1859
      %v1873 = vmul.f32 %v1833, %v1861
      %v1874 = vmul.f32 %v1834, %v1863
      %v1875 = vmul.f32 %v1835, %v1865
      %v1876 = vmul.f32 %v1836, %v1867
      %v1877 = vmul.f32 %v1837, %v1869
      %v1878 = vsub.f32 1.0, %v1870
      %v1879 = vsub.f32 1.0, %v1871
      %v1880 = vsub.f32 1.0, %v1872
      %v1881 = vsub.f32 1.0, %v1873
      %v1882 = vsub.f32 1.0, %v1874
      %v1883 = vsub.f32 1.0, %v1875
      %v1884 = vsub.f32 1.0, %v1876
      %v1885 = vsub.f32 1.0, %v1877
      %vm1886 = vcmp.lt.f32.partialorder %v1726, 0.0
      %vm1887 = vcmp.lt.f32.partialorder %v1727, 0.0
      %vm1888 = vcmp.lt.f32.partialorder %v1728, 0.0
      %vm1889 = vcmp.lt.f32.partialorder %v1729, 0.0
      %vm1890 = vcmp.lt.f32.partialorder %v1730, 0.0
      %vm1891 = vcmp.lt.f32.partialorder %v1731, 0.0
      %vm1892 = vcmp.lt.f32.partialorder %v1732, 0.0
      %vm1893 = vcmp.lt.f32.partialorder %v1733, 0.0
      %v1894 = vsub.f32 0.0, %v1878
      %v1895 = vsub.f32 0.0, %v1879
      %v1896 = vsub.f32 0.0, %v1880
      %v1897 = vsub.f32 0.0, %v1881
      %v1898 = vsub.f32 0.0, %v1882
      %v1899 = vsub.f32 0.0, %v1883
      %v1900 = vsub.f32 0.0, %v1884
      %v1901 = vsub.f32 0.0, %v1885
      %v1902 = vsel %vm1886, %v1894, %v1878
      %v1903 = vsel %vm1887, %v1895, %v1879
      %v1904 = vsel %vm1888, %v1896, %v1880
      %v1905 = vsel %vm1889, %v1897, %v1881
      %v1906 = vsel %vm1890, %v1898, %v1882
      %v1907 = vsel %vm1891, %v1899, %v1883
      %v1908 = vsel %vm1892, %v1900, %v1884
      %v1909 = vsel %vm1893, %v1901, %v1885
      %v1910 = vadd.f32 %v1902, 1.0
      %v1911 = vadd.f32 %v1903, 1.0
      %v1912 = vadd.f32 %v1904, 1.0
      %v1913 = vadd.f32 %v1905, 1.0
      %v1914 = vadd.f32 %v1906, 1.0
      %v1915 = vadd.f32 %v1907, 1.0
      %v1916 = vadd.f32 %v1908, 1.0
      %v1917 = vadd.f32 %v1909, 1.0
      %v1918 = vmul.f32 %v1718, %v1910
      %v1919 = vmul.f32 %v1719, %v1911
      %v1920 = vmul.f32 %v1720, %v1912
      %v1921 = vmul.f32 %v1721, %v1913
      %v1922 = vmul.f32 %v1722, %v1914
      %v1923 = vmul.f32 %v1723, %v1915
      %v1924 = vmul.f32 %v1724, %v1916
      %v1925 = vmul.f32 %v1725, %v1917
      %v1926 = vmul.f32 %v1367, %v1918
      %v1927 = vmul.f32 %v1369, %v1919
      %v1928 = vmul.f32 %v1410, %v1920
      %v1929 = vmul.f32 %v1412, %v1921
      %v1930 = vmul.f32 %v1371, %v1922
      %v1931 = vmul.f32 %v1373, %v1923
      %v1932 = vmul.f32 %v1414, %v1924
      %v1933 = vmul.f32 %v1416, %v1925
      %v1934 = vpack.c.bf16 %v1930, %v1926
      %v1935 = vpack.c.bf16 %v1931, %v1927
      %v1936 = vpack.c.bf16 %v1932, %v1928
      %v1937 = vpack.c.bf16 %v1933, %v1929
      %v1938 = vld [vmem:[%s12] sm:$0xf]
      %v1939 = vld [vmem:[%s12 + $0x4] sm:$0xf]
      %v1940 = vld [vmem:[%s12 + $0x8] sm:$0xf]
      %v1941 = vld [vmem:[%s12 + $0xc] sm:$0xf]
      %v1942 = vld [vmem:[%s12 + $0x10] sm:$0xf]
      %v1943 = vld [vmem:[%s12 + $0x14] sm:$0xf]
      %v1944 = vld [vmem:[%s12 + $0x18] sm:$0xf]
      %v1945 = vld [vmem:[%s12 + $0x1c] sm:$0xf]
      %v1946 = vld [vmem:[%s12 + $0x20] sm:$0xf]
      %v1947 = vld [vmem:[%s12 + $0x24] sm:$0xf]
      %v1948 = vld [vmem:[%s12 + $0x28] sm:$0xf]
      %v1949 = vld [vmem:[%s12 + $0x2c] sm:$0xf]
      %v1950 = vld [vmem:[%s12 + $0x30] sm:$0xf]
      %v1951 = vld [vmem:[%s12 + $0x34] sm:$0xf]
      %v1952 = vld [vmem:[%s12 + $0x38] sm:$0xf]
      %v1953 = vld [vmem:[%s12 + $0x3c] sm:$0xf]
      %v1954 = vld [vmem:[%s12 + $0x40] sm:$0xf]
      %v1955 = vld [vmem:[%s12 + $0x44] sm:$0xf]
      %v1956 = vld [vmem:[%s12 + $0x48] sm:$0xf]
      %v1957 = vld [vmem:[%s12 + $0x4c] sm:$0xf]
      %v1958 = vld [vmem:[%s12 + $0x50] sm:$0xf]
      %v1959 = vld [vmem:[%s12 + $0x54] sm:$0xf]
      %v1960 = vld [vmem:[%s12 + $0x58] sm:$0xf]
      %v1961 = vld [vmem:[%s12 + $0x5c] sm:$0xf]
      %v1962 = vld [vmem:[%s12 + $0x60] sm:$0xf]
      %v1963 = vld [vmem:[%s12 + $0x64] sm:$0xf]
      %v1964 = vld [vmem:[%s12 + $0x68] sm:$0xf]
      %v1965 = vld [vmem:[%s12 + $0x6c] sm:$0xf]
      %v1966 = vld [vmem:[%s12 + $0x70] sm:$0xf]
      %v1967 = vld [vmem:[%s12 + $0x74] sm:$0xf]
      %v1968 = vld [vmem:[%s12 + $0x78] sm:$0xf]
      %v1969 = vld [vmem:[%s12 + $0x7c] sm:$0xf]
      %v1970 = vld [vmem:[%s12 + $0x80] sm:$0xf]
      %v1971 = vld [vmem:[%s12 + $0x84] sm:$0xf]
      %v1972 = vld [vmem:[%s12 + $0x88] sm:$0xf]
      %v1973 = vld [vmem:[%s12 + $0x8c] sm:$0xf]
      %v1974 = vld [vmem:[%s12 + $0x90] sm:$0xf]
      %v1975 = vld [vmem:[%s12 + $0x94] sm:$0xf]
      %v1976 = vld [vmem:[%s12 + $0x98] sm:$0xf]
      %v1977 = vld [vmem:[%s12 + $0x9c] sm:$0xf]
      %v1978 = vld [vmem:[%s12 + $0xa0] sm:$0xf]
      %v1979 = vld [vmem:[%s12 + $0xa4] sm:$0xf]
      %v1980 = vld [vmem:[%s12 + $0xa8] sm:$0xf]
      %v1981 = vld [vmem:[%s12 + $0xac] sm:$0xf]
      %v1982 = vld [vmem:[%s12 + $0xb0] sm:$0xf]
      %v1983 = vld [vmem:[%s12 + $0xb4] sm:$0xf]
      %v1984 = vld [vmem:[%s12 + $0xb8] sm:$0xf]
      %v1985 = vld [vmem:[%s12 + $0xbc] sm:$0xf]
      %v1986 = vld [vmem:[%s12 + $0xc0] sm:$0xf]
      %v1987 = vld [vmem:[%s12 + $0xc4] sm:$0xf]
      %v1988 = vld [vmem:[%s12 + $0xc8] sm:$0xf]
      %v1989 = vld [vmem:[%s12 + $0xcc] sm:$0xf]
      %v1990 = vld [vmem:[%s12 + $0xd0] sm:$0xf]
      %v1991 = vld [vmem:[%s12 + $0xd4] sm:$0xf]
      %v1992 = vld [vmem:[%s12 + $0xd8] sm:$0xf]
      %v1993 = vld [vmem:[%s12 + $0xdc] sm:$0xf]
      %v1994 = vld [vmem:[%s12 + $0xe0] sm:$0xf]
      %v1995 = vld [vmem:[%s12 + $0xe4] sm:$0xf]
      %v1996 = vld [vmem:[%s12 + $0xe8] sm:$0xf]
      %v1997 = vld [vmem:[%s12 + $0xec] sm:$0xf]
      %v1998 = vld [vmem:[%s12 + $0xf0] sm:$0xf]
      %v1999 = vld [vmem:[%s12 + $0xf4] sm:$0xf]
      %v2000 = vld [vmem:[%s12 + $0xf8] sm:$0xf]
      %v2001 = vld [vmem:[%s12 + $0xfc] sm:$0xf]
      %v2002 = vld [vmem:[%s13] sm:$0x1]
      %v2004 = vlaneseq
      %v2005 = vshrl.u32 %v2004, 7
      %v2006 = vsub.s32 0, %v2005
      %v2007 = vrot.slane %v2002, %v2006
      %v2073 = vunpack.c.l.b16 %v1938
      %v2074 = vunpack.c.l.b16 %v1939
      %v2075 = vunpack.c.l.b16 %v1940
      %v2076 = vunpack.c.l.b16 %v1941
      %v2077 = vunpack.c.l.b16 %v1942
      %v2078 = vunpack.c.l.b16 %v1943
      %v2079 = vunpack.c.l.b16 %v1944
      %v2080 = vunpack.c.l.b16 %v1945
      %v2081 = vunpack.c.l.b16 %v1946
      %v2082 = vunpack.c.l.b16 %v1947
      %v2083 = vunpack.c.l.b16 %v1948
      %v2084 = vunpack.c.l.b16 %v1949
      %v2085 = vunpack.c.l.b16 %v1950
      %v2086 = vunpack.c.l.b16 %v1951
      %v2087 = vunpack.c.l.b16 %v1952
      %v2088 = vunpack.c.l.b16 %v1953
      %v2089 = vunpack.c.l.b16 %v1954
      %v2090 = vunpack.c.l.b16 %v1955
      %v2091 = vunpack.c.l.b16 %v1956
      %v2092 = vunpack.c.l.b16 %v1957
      %v2093 = vunpack.c.l.b16 %v1958
      %v2094 = vunpack.c.l.b16 %v1959
      %v2095 = vunpack.c.l.b16 %v1960
      %v2096 = vunpack.c.l.b16 %v1961
      %v2097 = vunpack.c.l.b16 %v1962
      %v2098 = vunpack.c.l.b16 %v1963
      %v2099 = vunpack.c.l.b16 %v1964
      %v2100 = vunpack.c.l.b16 %v1965
      %v2101 = vunpack.c.l.b16 %v1966
      %v2102 = vunpack.c.l.b16 %v1967
      %v2103 = vunpack.c.l.b16 %v1968
      %v2104 = vunpack.c.l.b16 %v1969
      %v2105 = vunpack.c.l.b16 %v1970
      %v2106 = vunpack.c.l.b16 %v1971
      %v2107 = vunpack.c.l.b16 %v1972
      %v2108 = vunpack.c.l.b16 %v1973
      %v2109 = vunpack.c.l.b16 %v1974
      %v2110 = vunpack.c.l.b16 %v1975
      %v2111 = vunpack.c.l.b16 %v1976
      %v2112 = vunpack.c.l.b16 %v1977
      %v2113 = vunpack.c.l.b16 %v1978
      %v2114 = vunpack.c.l.b16 %v1979
      %v2115 = vunpack.c.l.b16 %v1980
      %v2116 = vunpack.c.l.b16 %v1981
      %v2117 = vunpack.c.l.b16 %v1982
      %v2118 = vunpack.c.l.b16 %v1983
      %v2119 = vunpack.c.l.b16 %v1984
      %v2120 = vunpack.c.l.b16 %v1985
      %v2121 = vunpack.c.l.b16 %v1986
      %v2122 = vunpack.c.l.b16 %v1987
      %v2123 = vunpack.c.l.b16 %v1988
      %v2124 = vunpack.c.l.b16 %v1989
      %v2125 = vunpack.c.l.b16 %v1990
      %v2126 = vunpack.c.l.b16 %v1991
      %v2127 = vunpack.c.l.b16 %v1992
      %v2128 = vunpack.c.l.b16 %v1993
      %v2129 = vunpack.c.l.b16 %v1994
      %v2130 = vunpack.c.l.b16 %v1995
      %v2131 = vunpack.c.l.b16 %v1996
      %v2132 = vunpack.c.l.b16 %v1997
      %v2133 = vunpack.c.l.b16 %v1998
      %v2134 = vunpack.c.l.b16 %v1999
      %v2135 = vunpack.c.l.b16 %v2000
      %v2136 = vunpack.c.l.b16 %v2001
      %v2137 = vpack.c.b16 %v2074, %v2073
      %v2138 = vpack.c.b16 %v2076, %v2075
      %v2139 = vpack.c.b16 %v2078, %v2077
      %v2140 = vpack.c.b16 %v2080, %v2079
      %v2141 = vpack.c.b16 %v2082, %v2081
      %v2142 = vpack.c.b16 %v2084, %v2083
      %v2143 = vpack.c.b16 %v2086, %v2085
      %v2144 = vpack.c.b16 %v2088, %v2087
      %v2145 = vpack.c.b16 %v2090, %v2089
      %v2146 = vpack.c.b16 %v2092, %v2091
      %v2147 = vpack.c.b16 %v2094, %v2093
      %v2148 = vpack.c.b16 %v2096, %v2095
      %v2149 = vpack.c.b16 %v2098, %v2097
      %v2150 = vpack.c.b16 %v2100, %v2099
      %v2151 = vpack.c.b16 %v2102, %v2101
      %v2152 = vpack.c.b16 %v2104, %v2103
      %v2153 = vpack.c.b16 %v2106, %v2105
      %v2154 = vpack.c.b16 %v2108, %v2107
      %v2155 = vpack.c.b16 %v2110, %v2109
      %v2156 = vpack.c.b16 %v2112, %v2111
      %v2157 = vpack.c.b16 %v2114, %v2113
      %v2158 = vpack.c.b16 %v2116, %v2115
      %v2159 = vpack.c.b16 %v2118, %v2117
      %v2160 = vpack.c.b16 %v2120, %v2119
      %v2161 = vpack.c.b16 %v2122, %v2121
      %v2162 = vpack.c.b16 %v2124, %v2123
      %v2163 = vpack.c.b16 %v2126, %v2125
      %v2164 = vpack.c.b16 %v2128, %v2127
      %v2165 = vpack.c.b16 %v2130, %v2129
      %v2166 = vpack.c.b16 %v2132, %v2131
      %v2167 = vpack.c.b16 %v2134, %v2133
      %v2168 = vpack.c.b16 %v2136, %v2135
      %2201 = vmatprep.subr.bf16.mxu0 0
      %2202 = vmatpush1.bf16.msra.mxu0 %v2137
      %2203 = vmatprep.subr.bf16.mxu0 0
      %2204 = vmatpush1.bf16.msra.mxu0 %v2138
      %2205 = vmatprep.subr.bf16.mxu0 0
      %2206 = vmatpush1.bf16.msra.mxu0 %v2139
      %2207 = vmatprep.subr.bf16.mxu0 0
      %2208 = vmatpush1.bf16.msra.mxu0 %v2140
      %2209 = vmatprep.subr.bf16.mxu0 0
      %2210 = vmatpush1.bf16.msra.mxu0 %v2141
      %2211 = vmatprep.subr.bf16.mxu0 0
      %2212 = vmatpush1.bf16.msra.mxu0 %v2142
      %2213 = vmatprep.subr.bf16.mxu0 0
      %2214 = vmatpush1.bf16.msra.mxu0 %v2143
      %2215 = vmatprep.subr.bf16.mxu0 0
      %2216 = vmatpush1.bf16.msra.mxu0 %v2144
      %2217 = vmatprep.subr.bf16.mxu0 0
      %2218 = vmatpush1.bf16.msra.mxu0 %v2145
      %2219 = vmatprep.subr.bf16.mxu0 0
      %2220 = vmatpush1.bf16.msra.mxu0 %v2146
      %2221 = vmatprep.subr.bf16.mxu0 0
      %2222 = vmatpush1.bf16.msra.mxu0 %v2147
      %2223 = vmatprep.subr.bf16.mxu0 0
      %2224 = vmatpush1.bf16.msra.mxu0 %v2148
      %2225 = vmatprep.subr.bf16.mxu0 0
      %2226 = vmatpush1.bf16.msra.mxu0 %v2149
      %2227 = vmatprep.subr.bf16.mxu0 0
      %2228 = vmatpush1.bf16.msra.mxu0 %v2150
      %2229 = vmatprep.subr.bf16.mxu0 0
      %2230 = vmatpush1.bf16.msra.mxu0 %v2151
      %2231 = vmatprep.subr.bf16.mxu0 0
      %2232 = vmatpush1.bf16.msra.mxu0 %v2152
      %2233 = vmatprep.mubr.bf16.mxu0 %v1935
      %2234 = vmatmul.mubr.bf16.gmra.mrb[0].mxu0 %v1934
      %v2235 = vpop.f32.mrb[0].mxu0
      %v2236 = vadd.f32 %v2007, %v2235
      %v2237 = vpop.f32.mrb[0].mxu0
      %v2238 = vpop.f32.mrb[0].mxu0
      %v2239 = vadd.f32 %v2007, %v2238
      %v2240 = vpop.f32.mrb[0].mxu0
      %2241 = vdwg.mxu0
      %2242 = vmatprep.subr.bf16.mxu0 0
      %2243 = vmatpush1.bf16.msra.mxu0 %v2153
      %2244 = vmatprep.subr.bf16.mxu0 0
      %2245 = vmatpush1.bf16.msra.mxu0 %v2154
      %2246 = vmatprep.subr.bf16.mxu0 0
      %2247 = vmatpush1.bf16.msra.mxu0 %v2155
      %2248 = vmatprep.subr.bf16.mxu0 0
      %2249 = vmatpush1.bf16.msra.mxu0 %v2156
      %2250 = vmatprep.subr.bf16.mxu0 0
      %2251 = vmatpush1.bf16.msra.mxu0 %v2157
      %2252 = vmatprep.subr.bf16.mxu0 0
      %2253 = vmatpush1.bf16.msra.mxu0 %v2158
      %2254 = vmatprep.subr.bf16.mxu0 0
      %2255 = vmatpush1.bf16.msra.mxu0 %v2159
      %2256 = vmatprep.subr.bf16.mxu0 0
      %2257 = vmatpush1.bf16.msra.mxu0 %v2160
      %2258 = vmatprep.subr.bf16.mxu0 0
      %2259 = vmatpush1.bf16.msra.mxu0 %v2161
      %2260 = vmatprep.subr.bf16.mxu0 0
      %2261 = vmatpush1.bf16.msra.mxu0 %v2162
      %2262 = vmatprep.subr.bf16.mxu0 0
      %2263 = vmatpush1.bf16.msra.mxu0 %v2163
      %2264 = vmatprep.subr.bf16.mxu0 0
      %2265 = vmatpush1.bf16.msra.mxu0 %v2164
      %2266 = vmatprep.subr.bf16.mxu0 0
      %2267 = vmatpush1.bf16.msra.mxu0 %v2165
      %2268 = vmatprep.subr.bf16.mxu0 0
      %2269 = vmatpush1.bf16.msra.mxu0 %v2166
      %2270 = vmatprep.subr.bf16.mxu0 0
      %2271 = vmatpush1.bf16.msra.mxu0 %v2167
      %2272 = vmatprep.subr.bf16.mxu0 0
      %2273 = vmatpush1.bf16.msra.mxu0 %v2168
      %2274 = vmatprep.mubr.bf16.mxu0 %v1937
      %2275 = vmatmul.mubr.bf16.gmra.mrb[0].mxu0 %v1936
      %v2276 = vpop.f32.mrb[0].mxu0
      %v2277 = vadd.f32 %v2236, %v2276
      %v2278 = vpop.f32.mrb[0].mxu0
      %v2279 = vpop.f32.mrb[0].mxu0
      %v2280 = vadd.f32 %v2239, %v2279
      %v2281 = vpop.f32.mrb[0].mxu0
      %2282 = vdwg.mxu0
      %v2283 = vmul.f32 %v2277, 2.0
      %v2284 = vmul.f32 %v2280, 2.0
      %v2285 = vld [vmem:[%s14] sm:$0x1]
      %v2286 = vld [vmem:[%s15] sm:$0x1]
      %2287 = vadd.xlane.f32.xlu0 %v2283
      %v2288 = vpop.xlane.xlu0 %2287
      %2289 = vadd.xlane.f32.xlu0 %v2284
      %v2290 = vpop.xlane.xlu0 %2289
      %v2291 = vmul.f32 %v2288, %v1082
      %v2292 = vmul.f32 %v2290, %v1082
      %v2293 = vsub.f32 %v2283, %v2291
      %v2294 = vsub.f32 %v2284, %v2292
      %v2295 = vmul.f32 %v2293, %v2293
      %v2296 = vmul.f32 %v2294, %v2294
      %2297 = vadd.xlane.f32.xlu0 %v2295
      %v2298 = vpop.xlane.xlu0 %2297
      %2299 = vadd.xlane.f32.xlu0 %v2296
      %v2300 = vpop.xlane.xlu0 %2299
      %v2301 = vmul.f32 %v2298, %v1082
      %v2302 = vmul.f32 %v2300, %v1082
      %v2303 = vadd.f32 %v2301, 1e-05
      %v2304 = vadd.f32 %v2302, 1e-05
      %v2305 = vrsqrt.pop %v2303
      %v2306 = vrsqrt.pop %v2304
      %v2307 = vmul.f32 %v2293, %v2305
      %v2308 = vmul.f32 %v2294, %v2306
      %v2310 = vlaneseq
      %v2311 = vshrl.u32 %v2310, 7
      %v2312 = vsub.s32 0, %v2311
      %v2313 = vrot.slane %v2285, %v2312
      %v2315 = vmul.f32 %v2307, %v2313
      %v2316 = vmul.f32 %v2308, %v2313
      %v2318 = vlaneseq
      %v2319 = vshrl.u32 %v2318, 7
      %v2320 = vsub.s32 0, %v2319
      %v2321 = vrot.slane %v2286, %v2320
      %v2323 = vadd.f32 %v2315, %v2321
      %v2324 = vadd.f32 %v2316, %v2321
      %2325 = vst [vmem:[%s523] sm:$0xff] %v2323
      %2326 = vst [vmem:[%s523 + $0x8] sm:$0xff] %v2324
      %s2327 = smul.u32 2, %s27
      %p2328 = scmp.lt.s32.totalorder %s2327, 3
      %s2329 = scalar_select %p2328, %s2327, 3
      %s2330 = smul.addr %s2329, 8
      %s2331 = scalar_lea.vmem %s16, %s2330
      // Predicated region
      $region92: #{transformer_layer.1} parent=83 // pred_check
        %p2332 = pneg %p386
      $region93: #{transformer_layer.1} parent=83 // pred_check_branch
        %2334 = sbr.rel (%p2332) target = $region95
      $region94: #{transformer_layer.1} parent=83 // pred_region
        %s2335 = smul.u32 2, %s27
      $region95: #{transformer_layer.1} parent=83 // pred_fallthru
        _
    $region84: #{transformer_layer.1} parent=5 // pred_fallthru
      _
    %p2336 = scmp.le.s32.totalorder 2, %s22
    // Predicated region
    $region96: #{transformer_layer.1} parent=5 // pred_check
      %p2337 = pneg %p2336
    $region97: #{transformer_layer.1} parent=5 // pred_check_branch
      %2339 = sbr.rel (%p2337) target = $region99
    $region98: #{transformer_layer.1} parent=5 // pred_region
      %s2340 = ssub.s32 %s22, 2
      // Predicated region
      $region100: #{transformer_layer.1} parent=98 // pred_check
        %p2341 = pneg %p392
      $region101: #{transformer_layer.1} parent=98 // pred_check_branch
        %2343 = sbr.rel (%p2341) target = $region103
      $region102: #{transformer_layer.1} parent=98 // pred_region
        %s2344 = smul.u32 2, %s28
        %p2345 = scmp.lt.s32.totalorder %s2344, 3
        %s2346 = scalar_select %p2345, %s2344, 3
        %s2347 = smul.addr %s2346, 8
        %s2348 = scalar_lea.vmem %s16, %s2347
      $region103: #{transformer_layer.1} parent=98 // pred_fallthru
        _
    $region99: #{transformer_layer.1} parent=5 // pred_fallthru
      _
  $region6: #{transformer_layer.1} parent=0 // loop_footer
    %s26 = sadd.s32 1, %s22
  $region7: #{transformer_layer.1} parent=0 // loop_footer_branch
    %21 = sbr.rel target = $region3
  $region8: #{transformer_layer.1} parent=0 // loop_exit
    _

</llo_original>
